<compile_context>
chip_gen: v7x
topology: tpu7x:2x2x1
jax: 0.10.0
libtpu: 0.0.40
codegen_flags: <defaults>
</compile_context>

<pallas_src>
from functools import partial

import jax
import jax.numpy as jnp
from jax.experimental import pallas as pl
from jax.experimental.pallas import tpu as pltpu

EPS = 1e-5  # PyTorch BatchNorm1d default eps


# ----------------------------- Pallas kernel -------------------------------

def fused_gnn_kernel(a_ref, h0_ref, p_ref, w1_ref, b1_ref, w2_ref, b2_ref,
                     o_ref, *, mxu_dtype):
    """All L GIN layers + mean pool in one invocation (grid=(1,), loop fully unrolled)."""
    num_layers = w1_ref.shape[0]
    a = a_ref[...]                     # (Np, Np) adjacency, resident (mxu_dtype)
    h = h0_ref[...]                    # (Np, Dp) f32 residual carry, never leaves VMEM

    for l in range(num_layers):        # static unroll -> static weight slices w*_ref[l]
        # GINConv add-aggregation (edge_attr=None): agg = A @ relu(h)
        agg = jnp.dot(a, jnp.maximum(h, 0.0).astype(mxu_dtype),
                      preferred_element_type=jnp.float32)
        z = (h + agg).astype(mxu_dtype)
        # conv.mlp: Linear -> BN(folded) -> ReLU -> Linear, then outer BN (folded)
        t = jnp.dot(z, w1_ref[l], preferred_element_type=jnp.float32) + b1_ref[l]
        t = jnp.dot(jnp.maximum(t, 0.0).astype(mxu_dtype), w2_ref[l],
                    preferred_element_type=jnp.float32) + b2_ref[l]
        if l < num_layers - 1:
            t = jnp.maximum(t, 0.0)    # ReLU (dropout p=0.0 / eval => identity)
        h = t + h                      # residual, kept in f32

    # global mean pool epilogue: out = P @ h   (lane-dense (Gp, 128) store)
    o_ref[...] = jnp.dot(p_ref[...], h.astype(mxu_dtype),
                         preferred_element_type=jnp.float32).astype(o_ref.dtype)


# ------------------------------ wrappers ------------------------------------

def _round_up(x, m):
    return (x + m - 1) // m * m


def fold_and_pack_params(layers, emb_dim, d_pad):
    """Fold eval-mode BN into Linear, transpose to (in, out), zero-pad, stack over L."""
    pd = d_pad - emb_dim
    w1s, b1s, w2s, b2s = [], [], [], []
    for p in layers:
        s1 = p["g1"] / jnp.sqrt(p["v1"] + EPS)
        t1 = p["be1"] - p["m1"] * s1
        s2 = p["g2"] / jnp.sqrt(p["v2"] + EPS)
        t2 = p["be2"] - p["m2"] * s2
        w1 = p["w1"].T * s1[None, :]            # (in, out), BN1 folded per out-feature
        b1 = p["b1"] * s1 + t1
        w2 = p["w2"].T * s2[None, :]            # (in, out), outer BN folded
        b2 = p["b2"] * s2 + t2
        w1s.append(jnp.pad(w1, ((0, pd), (0, pd))))
        w2s.append(jnp.pad(w2, ((0, pd), (0, pd))))
        b1s.append(jnp.pad(b1, (0, pd)))
        b2s.append(jnp.pad(b2, (0, pd)))
    return (jnp.stack(w1s), jnp.stack(b1s)[:, None, :],
            jnp.stack(w2s), jnp.stack(b2s)[:, None, :])


def gnn_graphpred_fused(A, h0, P, w1s, b1s, w2s, b2s, *, mxu_dtype=jnp.float32):
    """One pallas_call, one grid point: A/h0/P/weights all VMEM-resident, loop in-kernel."""
    L, Dp, _ = w1s.shape
    Np = A.shape[0]
    Gp = P.shape[0]

    # MXU operands in mxu_dtype (bf16 on v6e/v7x for 2x throughput); biases / carry stay f32.
    A = A.astype(mxu_dtype)
    P = P.astype(mxu_dtype)
    w1s = w1s.astype(mxu_dtype)
    w2s = w2s.astype(mxu_dtype)
    ib = jnp.dtype(mxu_dtype).itemsize

    cost = pl.CostEstimate(
        flops=2 * L * (Np * Np * Dp + 2 * Np * Dp * Dp) + 2 * Gp * Np * Dp,
        transcendentals=0,
        bytes_accessed=ib * (Np * Np + Gp * Np + 2 * L * Dp * Dp)
                       + 4 * (Np * Dp + 2 * L * Dp + Gp * Dp),
    )

    const2 = lambda i: (0, 0)
    const3 = lambda i: (0, 0, 0)
    return pl.pallas_call(
        partial(fused_gnn_kernel, mxu_dtype=mxu_dtype),
        out_shape=jax.ShapeDtypeStruct((Gp, Dp), jnp.float32),
        grid=(1,),
        in_specs=[
            pl.BlockSpec((Np, Np), const2),     # A   (resident, DMA'd once)
            pl.BlockSpec((Np, Dp), const2),     # h0  (resident)
            pl.BlockSpec((Gp, Np), const2),     # P   (resident)
            pl.BlockSpec((L, Dp, Dp), const3),  # W1' all layers, resident
            pl.BlockSpec((L, 1, Dp), const3),   # b1'
            pl.BlockSpec((L, Dp, Dp), const3),  # W2'
            pl.BlockSpec((L, 1, Dp), const3),   # b2'
        ],
        out_specs=pl.BlockSpec((Gp, Dp), const2),  # lane-dense (Gp, 128) output
        compiler_params=pltpu.CompilerParams(
            dimension_semantics=("arbitrary",),
            vmem_limit_bytes=32 * 1024 * 1024,     # explicit (v5e default scoped = 16 MiB)
        ),
        cost_estimate=cost,
    )(A, h0, P, w1s, b1s, w2s, b2s)


# --------------------------- parameter setup --------------------------------

def init_params(key, emb_dim, num_layers, vocab=801):
    keys = jax.random.split(key, 1 + num_layers)
    emb = 0.1 * jax.random.normal(keys[0], (vocab, emb_dim), jnp.float32)
    layers = []
    for l in range(num_layers):
        k = jax.random.split(keys[1 + l], 12)
        scale = 1.0 / jnp.sqrt(jnp.float32(emb_dim))
        p = dict(
            w1=scale * jax.random.normal(k[0], (emb_dim, emb_dim), jnp.float32),  # torch (out, in)
            b1=0.1 * jax.random.normal(k[1], (emb_dim,), jnp.float32),
            g1=1.0 + 0.1 * jax.random.normal(k[2], (emb_dim,), jnp.float32),
            be1=0.1 * jax.random.normal(k[3], (emb_dim,), jnp.float32),
            m1=0.1 * jax.random.normal(k[4], (emb_dim,), jnp.float32),
            v1=jax.random.uniform(k[5], (emb_dim,), jnp.float32, 0.5, 1.5),
            w2=scale * jax.random.normal(k[6], (emb_dim, emb_dim), jnp.float32),
            b2=0.1 * jax.random.normal(k[7], (emb_dim,), jnp.float32),
            g2=1.0 + 0.1 * jax.random.normal(k[8], (emb_dim,), jnp.float32),
            be2=0.1 * jax.random.normal(k[9], (emb_dim,), jnp.float32),
            m2=0.1 * jax.random.normal(k[10], (emb_dim,), jnp.float32),
            v2=jax.random.uniform(k[11], (emb_dim,), jnp.float32, 0.5, 1.5),
        )
        layers.append(p)
    return dict(emb=emb, layers=layers)


# ------------------------------ reference -----------------------------------

def reference_forward(params, x_ids, A, P, num_layers):
    h = params["emb"][x_ids]
    for l, p in enumerate(params["layers"]):
        agg = A @ jnp.maximum(h, 0.0)
        z = h + agg
        t = z @ p["w1"].T + p["b1"]
        t = (t - p["m1"]) / jnp.sqrt(p["v1"] + EPS) * p["g1"] + p["be1"]
        t = jnp.maximum(t, 0.0)
        t = t @ p["w2"].T + p["b2"]
        t = (t - p["m2"]) / jnp.sqrt(p["v2"] + EPS) * p["g2"] + p["be2"]
        if l != num_layers - 1:
            t = jnp.maximum(t, 0.0)
        h = t + h
    return P @ h


# --------------------------------- main --------------------------------------

if __name__ == "__main__":
    N, D, E, G, L = 32, 32, 64, 2, 3  # nodes, emb_dim, edges, graphs, gnn layers (>=2)

    key = jax.random.PRNGKey(0)
    k_param, k_x, k_src, k_dst = jax.random.split(key, 4)

    params = init_params(k_param, D, L)

    x_ids = jax.random.randint(k_x, (N,), 0, 801)                 # node token ids
    src = jax.random.randint(k_src, (E,), 0, N)                   # edge_index[0]
    dst = jax.random.randint(k_dst, (E,), 0, N)                   # edge_index[1]
    batch = jnp.repeat(jnp.arange(G), N // G)                     # graph assignment

    # Dense adjacency for add-aggregation and mean-pool matrix (glue).
    A = jnp.zeros((N, N), jnp.float32).at[dst, src].add(1.0)
    counts = jnp.zeros((G,), jnp.float32).at[batch].add(1.0)
    onehot = (batch[None, :] == jnp.arange(G)[:, None]).astype(jnp.float32)
    P = onehot / counts[:, None]

    # --- host-side prep (done once): BN fold, transpose, lane/sublane padding ---
    Np = _round_up(N, 128)                    # lane-dense node axis, full MXU contraction
    Dp = max(128, _round_up(D, 128))          # lane-dense feature axis
    Gp = _round_up(G, 8)                      # sublane-padded graph axis
    folded = fold_and_pack_params(params["layers"], D, Dp)

    h0 = params["emb"][x_ids]                                     # embedding lookup (glue)
    h0_pad = jnp.pad(h0, ((0, Np - N), (0, Dp - D)))              # zero node/lane padding
    A_pad = jnp.pad(A, ((0, Np - N), (0, Np - N)))                # padded nodes are isolated
    P_pad = jnp.pad(P, ((0, Gp - G), (0, Np - N)))                # padded nodes never pooled

    ref = reference_forward(params, x_ids, A, P, L)

    # f32 MXU path: exact parity with the f32 reference.
    out_pad = gnn_graphpred_fused(A_pad, h0_pad, P_pad, *folded, mxu_dtype=jnp.float32)
    out_pad = jax.block_until_ready(out_pad)
    out = out_pad[:G, :D]
    assert out.shape == (G, D)
    assert jnp.allclose(out, ref, rtol=1e-3, atol=1e-3), "f32 mismatch vs reference"
    # padded lanes / graph rows must remain exactly zero
    assert jnp.all(out_pad[:, D:] == 0.0) and jnp.all(out_pad[G:, :] == 0.0)

    # bf16 MXU-operand path (v6e/v7x perf lever): f32 carry + f32 accumulation.
    out_bf16 = gnn_graphpred_fused(A_pad, h0_pad, P_pad, *folded, mxu_dtype=jnp.bfloat16)
    out_bf16 = jax.block_until_ready(out_bf16)[:G, :D]
    assert jnp.allclose(out_bf16, ref, rtol=5e-2, atol=5e-2), "bf16 mismatch vs reference"

    print("KERNEL_OK")
</pallas_src>

<mosaic_0001>
module attributes {stable_mosaic.version = 11 : i64} {
  func.func @fused_gnn_kernel(%arg0: i32, %arg1: memref<128x128xf32, #tpu.memory_space<vmem>>, %arg2: memref<128x128xf32, #tpu.memory_space<vmem>>, %arg3: memref<8x128xf32, #tpu.memory_space<vmem>>, %arg4: memref<3x128x128xf32, #tpu.memory_space<vmem>>, %arg5: memref<3x1x128xf32, #tpu.memory_space<vmem>>, %arg6: memref<3x128x128xf32, #tpu.memory_space<vmem>>, %arg7: memref<3x1x128xf32, #tpu.memory_space<vmem>>, %arg8: memref<8x128xf32, #tpu.memory_space<vmem>>) attributes {dimension_semantics = [#tpu.dimension_semantics<arbitrary>], iteration_bounds = array<i64: 1>, scalar_prefetch = 0 : i64, scratch_operands = 0 : i64, tpu.core_type = #tpu.core_type<tc>, window_params = [{pipeline_mode = #tpu.pipeline_mode<synchronous>, transform_indices = @transform_0, window_bounds = array<i64: 128, 128>}, {pipeline_mode = #tpu.pipeline_mode<synchronous>, transform_indices = @transform_1, window_bounds = array<i64: 128, 128>}, {pipeline_mode = #tpu.pipeline_mode<synchronous>, transform_indices = @transform_2, window_bounds = array<i64: 8, 128>}, {pipeline_mode = #tpu.pipeline_mode<synchronous>, transform_indices = @transform_3, window_bounds = array<i64: 3, 128, 128>}, {pipeline_mode = #tpu.pipeline_mode<synchronous>, transform_indices = @transform_4, window_bounds = array<i64: 3, 1, 128>}, {pipeline_mode = #tpu.pipeline_mode<synchronous>, transform_indices = @transform_5, window_bounds = array<i64: 3, 128, 128>}, {pipeline_mode = #tpu.pipeline_mode<synchronous>, transform_indices = @transform_6, window_bounds = array<i64: 3, 1, 128>}, {pipeline_mode = #tpu.pipeline_mode<synchronous>, transform_indices = @transform_7, window_bounds = array<i64: 8, 128>}]} {
    %c0 = arith.constant 0 : index
    %c0_0 = arith.constant 0 : index
    %0 = vector.load %arg1[%c0, %c0_0] : memref<128x128xf32, #tpu.memory_space<vmem>>, vector<128x128xf32>
    %c0_1 = arith.constant 0 : index
    %c0_2 = arith.constant 0 : index
    %1 = vector.load %arg2[%c0_1, %c0_2] : memref<128x128xf32, #tpu.memory_space<vmem>>, vector<128x128xf32>
    %cst = arith.constant 0.000000e+00 : f32
    %2 = vector.broadcast %cst : f32 to vector<128x128xf32>
    %3 = arith.maximumf %1, %2 : vector<128x128xf32>
    %cst_3 = arith.constant dense<0.000000e+00> : vector<128x128xf32>
    %4 = tpu.matmul %0, %3, %cst_3 {dimension_numbers = #tpu.dot_dimension_numbers<[1], [0], [0], [1], [0, 0, 1, 1], [], []>} : vector<128x128xf32>, vector<128x128xf32>, vector<128x128xf32> -> vector<128x128xf32>
    %5 = arith.addf %1, %4 : vector<128x128xf32>
    %c0_4 = arith.constant 0 : index
    %c0_5 = arith.constant 0 : index
    %c0_6 = arith.constant 0 : index
    %6 = vector.load %arg4[%c0_4, %c0_5, %c0_6] : memref<3x128x128xf32, #tpu.memory_space<vmem>>, vector<1x128x128xf32>
    %7 = vector.shape_cast %6 : vector<1x128x128xf32> to vector<128x128xf32>
    %cst_7 = arith.constant dense<0.000000e+00> : vector<128x128xf32>
    %8 = tpu.matmul %5, %7, %cst_7 {dimension_numbers = #tpu.dot_dimension_numbers<[1], [0], [0], [1], [0, 0, 1, 1], [], []>} : vector<128x128xf32>, vector<128x128xf32>, vector<128x128xf32> -> vector<128x128xf32>
    %c0_8 = arith.constant 0 : index
    %c0_9 = arith.constant 0 : index
    %c0_10 = arith.constant 0 : index
    %9 = vector.load %arg5[%c0_8, %c0_9, %c0_10] : memref<3x1x128xf32, #tpu.memory_space<vmem>>, vector<1x1x128xf32>
    %10 = vector.shape_cast %9 : vector<1x1x128xf32> to vector<1x128xf32>
    %11 = vector.broadcast %10 : vector<1x128xf32> to vector<128x128xf32>
    %12 = arith.addf %8, %11 : vector<128x128xf32>
    %cst_11 = arith.constant 0.000000e+00 : f32
    %13 = vector.broadcast %cst_11 : f32 to vector<128x128xf32>
    %14 = arith.maximumf %12, %13 : vector<128x128xf32>
    %c0_12 = arith.constant 0 : index
    %c0_13 = arith.constant 0 : index
    %c0_14 = arith.constant 0 : index
    %15 = vector.load %arg6[%c0_12, %c0_13, %c0_14] : memref<3x128x128xf32, #tpu.memory_space<vmem>>, vector<1x128x128xf32>
    %16 = vector.shape_cast %15 : vector<1x128x128xf32> to vector<128x128xf32>
    %cst_15 = arith.constant dense<0.000000e+00> : vector<128x128xf32>
    %17 = tpu.matmul %14, %16, %cst_15 {dimension_numbers = #tpu.dot_dimension_numbers<[1], [0], [0], [1], [0, 0, 1, 1], [], []>} : vector<128x128xf32>, vector<128x128xf32>, vector<128x128xf32> -> vector<128x128xf32>
    %c0_16 = arith.constant 0 : index
    %c0_17 = arith.constant 0 : index
    %c0_18 = arith.constant 0 : index
    %18 = vector.load %arg7[%c0_16, %c0_17, %c0_18] : memref<3x1x128xf32, #tpu.memory_space<vmem>>, vector<1x1x128xf32>
    %19 = vector.shape_cast %18 : vector<1x1x128xf32> to vector<1x128xf32>
    %20 = vector.broadcast %19 : vector<1x128xf32> to vector<128x128xf32>
    %21 = arith.addf %17, %20 : vector<128x128xf32>
    %cst_19 = arith.constant 0.000000e+00 : f32
    %22 = vector.broadcast %cst_19 : f32 to vector<128x128xf32>
    %23 = arith.maximumf %21, %22 : vector<128x128xf32>
    %24 = arith.addf %23, %1 : vector<128x128xf32>
    %cst_20 = arith.constant 0.000000e+00 : f32
    %25 = vector.broadcast %cst_20 : f32 to vector<128x128xf32>
    %26 = arith.maximumf %24, %25 : vector<128x128xf32>
    %cst_21 = arith.constant dense<0.000000e+00> : vector<128x128xf32>
    %27 = tpu.matmul %0, %26, %cst_21 {dimension_numbers = #tpu.dot_dimension_numbers<[1], [0], [0], [1], [0, 0, 1, 1], [], []>} : vector<128x128xf32>, vector<128x128xf32>, vector<128x128xf32> -> vector<128x128xf32>
    %28 = arith.addf %24, %27 : vector<128x128xf32>
    %c1 = arith.constant 1 : index
    %c0_22 = arith.constant 0 : index
    %c0_23 = arith.constant 0 : index
    %29 = vector.load %arg4[%c1, %c0_22, %c0_23] : memref<3x128x128xf32, #tpu.memory_space<vmem>>, vector<1x128x128xf32>
    %30 = vector.shape_cast %29 : vector<1x128x128xf32> to vector<128x128xf32>
    %cst_24 = arith.constant dense<0.000000e+00> : vector<128x128xf32>
    %31 = tpu.matmul %28, %30, %cst_24 {dimension_numbers = #tpu.dot_dimension_numbers<[1], [0], [0], [1], [0, 0, 1, 1], [], []>} : vector<128x128xf32>, vector<128x128xf32>, vector<128x128xf32> -> vector<128x128xf32>
    %c1_25 = arith.constant 1 : index
    %c0_26 = arith.constant 0 : index
    %c0_27 = arith.constant 0 : index
    %32 = vector.load %arg5[%c1_25, %c0_26, %c0_27] : memref<3x1x128xf32, #tpu.memory_space<vmem>>, vector<1x1x128xf32>
    %33 = vector.shape_cast %32 : vector<1x1x128xf32> to vector<1x128xf32>
    %34 = vector.broadcast %33 : vector<1x128xf32> to vector<128x128xf32>
    %35 = arith.addf %31, %34 : vector<128x128xf32>
    %cst_28 = arith.constant 0.000000e+00 : f32
    %36 = vector.broadcast %cst_28 : f32 to vector<128x128xf32>
    %37 = arith.maximumf %35, %36 : vector<128x128xf32>
    %c1_29 = arith.constant 1 : index
    %c0_30 = arith.constant 0 : index
    %c0_31 = arith.constant 0 : index
    %38 = vector.load %arg6[%c1_29, %c0_30, %c0_31] : memref<3x128x128xf32, #tpu.memory_space<vmem>>, vector<1x128x128xf32>
    %39 = vector.shape_cast %38 : vector<1x128x128xf32> to vector<128x128xf32>
    %cst_32 = arith.constant dense<0.000000e+00> : vector<128x128xf32>
    %40 = tpu.matmul %37, %39, %cst_32 {dimension_numbers = #tpu.dot_dimension_numbers<[1], [0], [0], [1], [0, 0, 1, 1], [], []>} : vector<128x128xf32>, vector<128x128xf32>, vector<128x128xf32> -> vector<128x128xf32>
    %c1_33 = arith.constant 1 : index
    %c0_34 = arith.constant 0 : index
    %c0_35 = arith.constant 0 : index
    %41 = vector.load %arg7[%c1_33, %c0_34, %c0_35] : memref<3x1x128xf32, #tpu.memory_space<vmem>>, vector<1x1x128xf32>
    %42 = vector.shape_cast %41 : vector<1x1x128xf32> to vector<1x128xf32>
    %43 = vector.broadcast %42 : vector<1x128xf32> to vector<128x128xf32>
    %44 = arith.addf %40, %43 : vector<128x128xf32>
    %cst_36 = arith.constant 0.000000e+00 : f32
    %45 = vector.broadcast %cst_36 : f32 to vector<128x128xf32>
    %46 = arith.maximumf %44, %45 : vector<128x128xf32>
    %47 = arith.addf %46, %24 : vector<128x128xf32>
    %cst_37 = arith.constant 0.000000e+00 : f32
    %48 = vector.broadcast %cst_37 : f32 to vector<128x128xf32>
    %49 = arith.maximumf %47, %48 : vector<128x128xf32>
    %cst_38 = arith.constant dense<0.000000e+00> : vector<128x128xf32>
    %50 = tpu.matmul %0, %49, %cst_38 {dimension_numbers = #tpu.dot_dimension_numbers<[1], [0], [0], [1], [0, 0, 1, 1], [], []>} : vector<128x128xf32>, vector<128x128xf32>, vector<128x128xf32> -> vector<128x128xf32>
    %51 = arith.addf %47, %50 : vector<128x128xf32>
    %c2 = arith.constant 2 : index
    %c0_39 = arith.constant 0 : index
    %c0_40 = arith.constant 0 : index
    %52 = vector.load %arg4[%c2, %c0_39, %c0_40] : memref<3x128x128xf32, #tpu.memory_space<vmem>>, vector<1x128x128xf32>
    %53 = vector.shape_cast %52 : vector<1x128x128xf32> to vector<128x128xf32>
    %cst_41 = arith.constant dense<0.000000e+00> : vector<128x128xf32>
    %54 = tpu.matmul %51, %53, %cst_41 {dimension_numbers = #tpu.dot_dimension_numbers<[1], [0], [0], [1], [0, 0, 1, 1], [], []>} : vector<128x128xf32>, vector<128x128xf32>, vector<128x128xf32> -> vector<128x128xf32>
    %c2_42 = arith.constant 2 : index
    %c0_43 = arith.constant 0 : index
    %c0_44 = arith.constant 0 : index
    %55 = vector.load %arg5[%c2_42, %c0_43, %c0_44] : memref<3x1x128xf32, #tpu.memory_space<vmem>>, vector<1x1x128xf32>
    %56 = vector.shape_cast %55 : vector<1x1x128xf32> to vector<1x128xf32>
    %57 = vector.broadcast %56 : vector<1x128xf32> to vector<128x128xf32>
    %58 = arith.addf %54, %57 : vector<128x128xf32>
    %cst_45 = arith.constant 0.000000e+00 : f32
    %59 = vector.broadcast %cst_45 : f32 to vector<128x128xf32>
    %60 = arith.maximumf %58, %59 : vector<128x128xf32>
    %c2_46 = arith.constant 2 : index
    %c0_47 = arith.constant 0 : index
    %c0_48 = arith.constant 0 : index
    %61 = vector.load %arg6[%c2_46, %c0_47, %c0_48] : memref<3x128x128xf32, #tpu.memory_space<vmem>>, vector<1x128x128xf32>
    %62 = vector.shape_cast %61 : vector<1x128x128xf32> to vector<128x128xf32>
    %cst_49 = arith.constant dense<0.000000e+00> : vector<128x128xf32>
    %63 = tpu.matmul %60, %62, %cst_49 {dimension_numbers = #tpu.dot_dimension_numbers<[1], [0], [0], [1], [0, 0, 1, 1], [], []>} : vector<128x128xf32>, vector<128x128xf32>, vector<128x128xf32> -> vector<128x128xf32>
    %c2_50 = arith.constant 2 : index
    %c0_51 = arith.constant 0 : index
    %c0_52 = arith.constant 0 : index
    %64 = vector.load %arg7[%c2_50, %c0_51, %c0_52] : memref<3x1x128xf32, #tpu.memory_space<vmem>>, vector<1x1x128xf32>
    %65 = vector.shape_cast %64 : vector<1x1x128xf32> to vector<1x128xf32>
    %66 = vector.broadcast %65 : vector<1x128xf32> to vector<128x128xf32>
    %67 = arith.addf %63, %66 : vector<128x128xf32>
    %68 = arith.addf %67, %47 : vector<128x128xf32>
    %c0_53 = arith.constant 0 : index
    %c0_54 = arith.constant 0 : index
    %69 = vector.load %arg3[%c0_53, %c0_54] : memref<8x128xf32, #tpu.memory_space<vmem>>, vector<8x128xf32>
    %cst_55 = arith.constant dense<0.000000e+00> : vector<8x128xf32>
    %70 = tpu.matmul %69, %68, %cst_55 {dimension_numbers = #tpu.dot_dimension_numbers<[1], [0], [0], [1], [0, 0, 1, 1], [], []>} : vector<8x128xf32>, vector<128x128xf32>, vector<8x128xf32> -> vector<8x128xf32>
    %c0_56 = arith.constant 0 : index
    %c0_57 = arith.constant 0 : index
    %71 = vector.load %arg8[%c0_56, %c0_57] : memref<8x128xf32, #tpu.memory_space<vmem>>, vector<8x128xf32>
    tpu.vector_store %arg8[%c0_56, %c0_57], %70 {strides = array<i32>} : memref<8x128xf32, #tpu.memory_space<vmem>>, vector<8x128xf32>,
    return
  }
  func.func @transform_0(%arg0: i32) -> (i32, i32) {
    %c0_i32 = arith.constant 0 : i32
    %c0_i32_0 = arith.constant 0 : i32
    %c0_i32_1 = arith.constant 0 : i32
    return %c0_i32, %c0_i32_0 : i32, i32
  }
  func.func @transform_1(%arg0: i32) -> (i32, i32) {
    %c0_i32 = arith.constant 0 : i32
    %c0_i32_0 = arith.constant 0 : i32
    %c0_i32_1 = arith.constant 0 : i32
    return %c0_i32, %c0_i32_0 : i32, i32
  }
  func.func @transform_2(%arg0: i32) -> (i32, i32) {
    %c0_i32 = arith.constant 0 : i32
    %c0_i32_0 = arith.constant 0 : i32
    %c0_i32_1 = arith.constant 0 : i32
    return %c0_i32, %c0_i32_0 : i32, i32
  }
  func.func @transform_3(%arg0: i32) -> (i32, i32, i32) {
    %c0_i32 = arith.constant 0 : i32
    %c0_i32_0 = arith.constant 0 : i32
    %c0_i32_1 = arith.constant 0 : i32
    %c0_i32_2 = arith.constant 0 : i32
    return %c0_i32, %c0_i32_0, %c0_i32_1 : i32, i32, i32
  }
  func.func @transform_4(%arg0: i32) -> (i32, i32, i32) {
    %c0_i32 = arith.constant 0 : i32
    %c0_i32_0 = arith.constant 0 : i32
    %c0_i32_1 = arith.constant 0 : i32
    %c0_i32_2 = arith.constant 0 : i32
    return %c0_i32, %c0_i32_0, %c0_i32_1 : i32, i32, i32
  }
  func.func @transform_5(%arg0: i32) -> (i32, i32, i32) {
    %c0_i32 = arith.constant 0 : i32
    %c0_i32_0 = arith.constant 0 : i32
    %c0_i32_1 = arith.constant 0 : i32
    %c0_i32_2 = arith.constant 0 : i32
    return %c0_i32, %c0_i32_0, %c0_i32_1 : i32, i32, i32
  }
  func.func @transform_6(%arg0: i32) -> (i32, i32, i32) {
    %c0_i32 = arith.constant 0 : i32
    %c0_i32_0 = arith.constant 0 : i32
    %c0_i32_1 = arith.constant 0 : i32
    %c0_i32_2 = arith.constant 0 : i32
    return %c0_i32, %c0_i32_0, %c0_i32_1 : i32, i32, i32
  }
  func.func @transform_7(%arg0: i32) -> (i32, i32) {
    %c0_i32 = arith.constant 0 : i32
    %c0_i32_0 = arith.constant 0 : i32
    %c0_i32_1 = arith.constant 0 : i32
    return %c0_i32, %c0_i32_0 : i32, i32
  }
}

</mosaic_0001>

<llo_original>
// kernel: tpu_custom_call.1
$region0: #{tpu_custom_call.1}
  #allocation0 [shape = 'u32[]', space=smem, size = 0x4, offset = 0x4, fixed_abs, tag = 'smem constant byte address 0x4 - core index']
  #allocation1 [shape = 'u32[144,128]{1,0:T(1,128)}', space=vmem, size = 0x12000, scoped, tag = 'internal scratch']
  %s0 = inlined_call_operand.hbm [shape: f32[128,128], index: 0, kind: input, shape index: {}]
  %s1 = inlined_call_operand.hbm [shape: f32[128,128], index: 1, kind: input, shape index: {}]
  %s2 = inlined_call_operand.hbm [shape: f32[8,128], index: 2, kind: input, shape index: {}]
  %s3 = inlined_call_operand.hbm [shape: f32[3,128,128], index: 3, kind: input, shape index: {}]
  %s4 = inlined_call_operand.vmem [shape: f32[3,1,128], index: 4, kind: input, shape index: {}]
  %s5 = inlined_call_operand.hbm [shape: f32[3,128,128], index: 5, kind: input, shape index: {}]
  %s6 = inlined_call_operand.vmem [shape: f32[3,1,128], index: 6, kind: input, shape index: {}]
  %s7 = inlined_call_operand.hbm [shape: f32[8,128], index: 7, kind: output, shape index: {}]
  %s8 = sld [smem:[#allocation0]]
  $region58: #{tpu_custom_call.1} parent=0
    _
  %s10 = ssub.s32 1, %s8
  %s11 = scalar_select 0, %s10, %s8
  $region1: #{tpu_custom_call.1} parent=0
    #allocation2 [shape = 'u8[65536]{0}', space=vmem, size = 0x10000, scoped, tag = 'input window, operand 0, single buffered']
    #allocation3 [shape = 's32[1]{0}', space=sflag, size = 0x4, scoped, tag = 'scoped memory for tpu_custom_call.1']
    #allocation4 [shape = 's32[1]{0}', space=sflag, size = 0x4, scoped, tag = 'scoped memory for tpu_custom_call.1']
    #allocation5 [shape = 'u8[65536]{0}', space=vmem, size = 0x10000, scoped, tag = 'input window, operand 1, single buffered']
    #allocation6 [shape = 's32[1]{0}', space=sflag, size = 0x4, scoped, tag = 'scoped memory for tpu_custom_call.1']
    #allocation7 [shape = 'u8[4096]{0}', space=vmem, size = 0x1000, scoped, tag = 'input window, operand 2, single buffered']
    #allocation8 [shape = 'u8[196608]{0}', space=vmem, size = 0x30000, scoped, tag = 'input window, operand 3, single buffered']
    #allocation9 [shape = 's32[1]{0}', space=sflag, size = 0x4, scoped, tag = 'scoped memory for tpu_custom_call.1']
    #allocation10 [shape = 'u8[196608]{0}', space=vmem, size = 0x30000, scoped, tag = 'input window, operand 5, single buffered']
    #allocation11 [shape = 'u8[4096]{0}', space=vmem, size = 0x1000, scoped, tag = 'output window, operand 0, single buffered']
    %12 = vsyncpa [#allocation3], 0
    %13 = vsyncpa [#allocation6], 0
    %14 = vsyncpa [#allocation9], 0
    %15 = vsyncpa [#allocation4], 0
    // Predicated region
    $region2: #{tpu_custom_call.1} parent=1 // pred_check
      _
    $region3: #{tpu_custom_call.1} parent=1 // pred_check_branch
      %17 = sbr.rel (0) target = $region5
    $region4: #{tpu_custom_call.1} parent=1 // pred_region
      %s19 = ssub.s32 2048, 2048
      %20 = vsyncadd [#allocation3], %s19
      %s21 = sshll.u32 [#allocation2], 4
      %s22 = int_to_ptr.vmem [resolvable:$true] %s21
      %27 = dma.hbm_to_vmem [thread:$0]  %s0, 2048, %s22, [#allocation3], 128, 128, 8
    $region5: #{tpu_custom_call.1} parent=1 // pred_fallthru
      _
    // Predicated region
    $region6: #{tpu_custom_call.1} parent=1 // pred_check
      _
    $region7: #{tpu_custom_call.1} parent=1 // pred_check_branch
      %29 = sbr.rel (0) target = $region9
    $region8: #{tpu_custom_call.1} parent=1 // pred_region
      %s31 = ssub.s32 2048, 2048
      %32 = vsyncadd [#allocation6], %s31
      %s33 = sshll.u32 [#allocation5], 4
      %s34 = int_to_ptr.vmem [resolvable:$true] %s33
      %39 = dma.hbm_to_vmem [thread:$0]  %s1, 2048, %s34, [#allocation6], 128, 128, 8
    $region9: #{tpu_custom_call.1} parent=1 // pred_fallthru
      _
    // Predicated region
    $region10: #{tpu_custom_call.1} parent=1 // pred_check
      _
    $region11: #{tpu_custom_call.1} parent=1 // pred_check_branch
      %41 = sbr.rel (0) target = $region13
    $region12: #{tpu_custom_call.1} parent=1 // pred_region
      %s43 = ssub.s32 128, 128
      %44 = vsyncadd [#allocation6], %s43
      %s46 = sshll.u32 [#allocation7], 4
      %s47 = int_to_ptr.vmem [resolvable:$true] %s46
      %49 = dma.hbm_to_vmem [thread:$0]  %s2, 128, %s47, [#allocation6]
    $region13: #{tpu_custom_call.1} parent=1 // pred_fallthru
      _
    // Predicated region
    $region14: #{tpu_custom_call.1} parent=1 // pred_check
      _
    $region15: #{tpu_custom_call.1} parent=1 // pred_check_branch
      %51 = sbr.rel (0) target = $region17
    $region16: #{tpu_custom_call.1} parent=1 // pred_region
      %s53 = ssub.s32 6144, 6144
      %54 = vsyncadd [#allocation9], %s53
      %s55 = sshll.u32 [#allocation8], 4
      %s56 = int_to_ptr.vmem [resolvable:$true] %s55
      %61 = dma.hbm_to_vmem [thread:$0]  %s3, 6144, %s56, [#allocation9], 128, 128, 8
    $region17: #{tpu_custom_call.1} parent=1 // pred_fallthru
      _
    // Predicated region
    $region18: #{tpu_custom_call.1} parent=1 // pred_check
      _
    $region19: #{tpu_custom_call.1} parent=1 // pred_check_branch
      %63 = sbr.rel (0) target = $region21
    $region20: #{tpu_custom_call.1} parent=1 // pred_region
      _
    $region21: #{tpu_custom_call.1} parent=1 // pred_fallthru
      _
    // Predicated region
    $region22: #{tpu_custom_call.1} parent=1 // pred_check
      _
    $region23: #{tpu_custom_call.1} parent=1 // pred_check_branch
      %65 = sbr.rel (0) target = $region25
    $region24: #{tpu_custom_call.1} parent=1 // pred_region
      %s67 = ssub.s32 6144, 6144
      %68 = vsyncadd [#allocation9], %s67
      %s69 = sshll.u32 [#allocation10], 4
      %s70 = int_to_ptr.vmem [resolvable:$true] %s69
      %75 = dma.hbm_to_vmem [thread:$0]  %s5, 6144, %s70, [#allocation9], 128, 128, 8
    $region25: #{tpu_custom_call.1} parent=1 // pred_fallthru
      _
    // Predicated region
    $region26: #{tpu_custom_call.1} parent=1 // pred_check
      _
    $region27: #{tpu_custom_call.1} parent=1 // pred_check_branch
      %77 = sbr.rel (0) target = $region29
    $region28: #{tpu_custom_call.1} parent=1 // pred_region
      _
    $region29: #{tpu_custom_call.1} parent=1 // pred_fallthru
      _
    // Predicated region
    $region30: #{tpu_custom_call.1} parent=1 // pred_check
      _
    $region31: #{tpu_custom_call.1} parent=1 // pred_check_branch
      %79 = sbr.rel (0) target = $region33
    $region32: #{tpu_custom_call.1} parent=1 // pred_region
      %80 = dma.done [#allocation3], 2048
    $region33: #{tpu_custom_call.1} parent=1 // pred_fallthru
      _
    // Predicated region
    $region34: #{tpu_custom_call.1} parent=1 // pred_check
      _
    $region35: #{tpu_custom_call.1} parent=1 // pred_check_branch
      %82 = sbr.rel (0) target = $region37
    $region36: #{tpu_custom_call.1} parent=1 // pred_region
      %83 = dma.done [#allocation6], 2048
    $region37: #{tpu_custom_call.1} parent=1 // pred_fallthru
      _
    // Predicated region
    $region38: #{tpu_custom_call.1} parent=1 // pred_check
      _
    $region39: #{tpu_custom_call.1} parent=1 // pred_check_branch
      %85 = sbr.rel (0) target = $region41
    $region40: #{tpu_custom_call.1} parent=1 // pred_region
      %86 = dma.done [#allocation6], 128
    $region41: #{tpu_custom_call.1} parent=1 // pred_fallthru
      _
    // Predicated region
    $region42: #{tpu_custom_call.1} parent=1 // pred_check
      _
    $region43: #{tpu_custom_call.1} parent=1 // pred_check_branch
      %88 = sbr.rel (0) target = $region45
    $region44: #{tpu_custom_call.1} parent=1 // pred_region
      %89 = dma.done [#allocation9], 6144
    $region45: #{tpu_custom_call.1} parent=1 // pred_fallthru
      _
    // Predicated region
    $region46: #{tpu_custom_call.1} parent=1 // pred_check
      _
    $region47: #{tpu_custom_call.1} parent=1 // pred_check_branch
      %91 = sbr.rel (0) target = $region49
    $region48: #{tpu_custom_call.1} parent=1 // pred_region
      %92 = dma.done [#allocation9], 6144
    $region49: #{tpu_custom_call.1} parent=1 // pred_fallthru
      _
    %v93 = vld [vmem:[#allocation2] sm:$0xff]
    %v94 = vld [vmem:[#allocation2 + $0x8] sm:$0xff]
    %v95 = vld [vmem:[#allocation2 + $0x10] sm:$0xff]
    %v96 = vld [vmem:[#allocation2 + $0x18] sm:$0xff]
    %v97 = vld [vmem:[#allocation2 + $0x20] sm:$0xff]
    %v98 = vld [vmem:[#allocation2 + $0x28] sm:$0xff]
    %v99 = vld [vmem:[#allocation2 + $0x30] sm:$0xff]
    %v100 = vld [vmem:[#allocation2 + $0x38] sm:$0xff]
    %v101 = vld [vmem:[#allocation2 + $0x40] sm:$0xff]
    %v102 = vld [vmem:[#allocation2 + $0x48] sm:$0xff]
    %v103 = vld [vmem:[#allocation2 + $0x50] sm:$0xff]
    %v104 = vld [vmem:[#allocation2 + $0x58] sm:$0xff]
    %v105 = vld [vmem:[#allocation2 + $0x60] sm:$0xff]
    %v106 = vld [vmem:[#allocation2 + $0x68] sm:$0xff]
    %v107 = vld [vmem:[#allocation2 + $0x70] sm:$0xff]
    %v108 = vld [vmem:[#allocation2 + $0x78] sm:$0xff]
    %v109 = vld [vmem:[#allocation5] sm:$0xff]
    %v110 = vld [vmem:[#allocation5 + $0x8] sm:$0xff]
    %v111 = vld [vmem:[#allocation5 + $0x10] sm:$0xff]
    %v112 = vld [vmem:[#allocation5 + $0x18] sm:$0xff]
    %v113 = vld [vmem:[#allocation5 + $0x20] sm:$0xff]
    %v114 = vld [vmem:[#allocation5 + $0x28] sm:$0xff]
    %v115 = vld [vmem:[#allocation5 + $0x30] sm:$0xff]
    %v116 = vld [vmem:[#allocation5 + $0x38] sm:$0xff]
    %v117 = vld [vmem:[#allocation5 + $0x40] sm:$0xff]
    %v118 = vld [vmem:[#allocation5 + $0x48] sm:$0xff]
    %v119 = vld [vmem:[#allocation5 + $0x50] sm:$0xff]
    %v120 = vld [vmem:[#allocation5 + $0x58] sm:$0xff]
    %v121 = vld [vmem:[#allocation5 + $0x60] sm:$0xff]
    %v122 = vld [vmem:[#allocation5 + $0x68] sm:$0xff]
    %v123 = vld [vmem:[#allocation5 + $0x70] sm:$0xff]
    %v124 = vld [vmem:[#allocation5 + $0x78] sm:$0xff]
    %v125 = vmax.f32 %v109, 0.0
    %v126 = vmax.f32 %v110, 0.0
    %v127 = vmax.f32 %v111, 0.0
    %v128 = vmax.f32 %v112, 0.0
    %v129 = vmax.f32 %v113, 0.0
    %v130 = vmax.f32 %v114, 0.0
    %v131 = vmax.f32 %v115, 0.0
    %v132 = vmax.f32 %v116, 0.0
    %v133 = vmax.f32 %v117, 0.0
    %v134 = vmax.f32 %v118, 0.0
    %v135 = vmax.f32 %v119, 0.0
    %v136 = vmax.f32 %v120, 0.0
    %v137 = vmax.f32 %v121, 0.0
    %v138 = vmax.f32 %v122, 0.0
    %v139 = vmax.f32 %v123, 0.0
    %v140 = vmax.f32 %v124, 0.0
    %141 = vmatprep.subr.mxu0 0.0
    %142 = vmatpush1.msra.mxu0 %v125
    %143 = vmatprep.subr.mxu0 0.0
    %144 = vmatpush1.msra.mxu0 %v126
    %145 = vmatprep.subr.mxu0 0.0
    %146 = vmatpush1.msra.mxu0 %v127
    %147 = vmatprep.subr.mxu0 0.0
    %148 = vmatpush1.msra.mxu0 %v128
    %149 = vmatprep.subr.mxu0 0.0
    %150 = vmatpush1.msra.mxu0 %v129
    %151 = vmatprep.subr.mxu0 0.0
    %152 = vmatpush1.msra.mxu0 %v130
    %153 = vmatprep.subr.mxu0 0.0
    %154 = vmatpush1.msra.mxu0 %v131
    %155 = vmatprep.subr.mxu0 0.0
    %156 = vmatpush1.msra.mxu0 %v132
    %157 = vmatprep.subr.mxu0 0.0
    %158 = vmatpush1.msra.mxu0 %v133
    %159 = vmatprep.subr.mxu0 0.0
    %160 = vmatpush1.msra.mxu0 %v134
    %161 = vmatprep.subr.mxu0 0.0
    %162 = vmatpush1.msra.mxu0 %v135
    %163 = vmatprep.subr.mxu0 0.0
    %164 = vmatpush1.msra.mxu0 %v136
    %165 = vmatprep.subr.mxu0 0.0
    %166 = vmatpush1.msra.mxu0 %v137
    %167 = vmatprep.subr.mxu0 0.0
    %168 = vmatpush1.msra.mxu0 %v138
    %169 = vmatprep.subr.mxu0 0.0
    %170 = vmatpush1.msra.mxu0 %v139
    %171 = vmatprep.subr.mxu0 0.0
    %172 = vmatpush1.msra.mxu0 %v140
    %173 = vmatprep.subr.mxu0 0.0
    %174 = vmatpush1.msra.mxu0 0.0
    %175 = vmatprep.subr.mxu0 0.0
    %176 = vmatpush1.msra.mxu0 0.0
    %177 = vmatprep.subr.mxu0 0.0
    %178 = vmatpush1.msra.mxu0 0.0
    %179 = vmatprep.subr.mxu0 0.0
    %180 = vmatpush1.msra.mxu0 0.0
    %181 = vmatprep.subr.mxu0 0.0
    %182 = vmatpush1.msra.mxu0 0.0
    %183 = vmatprep.subr.mxu0 0.0
    %184 = vmatpush1.msra.mxu0 0.0
    %185 = vmatprep.subr.mxu0 0.0
    %186 = vmatpush1.msra.mxu0 0.0
    %187 = vmatprep.subr.mxu0 0.0
    %188 = vmatpush1.msra.mxu0 0.0
    %189 = vmatprep.subr.mxu0 0.0
    %190 = vmatpush1.msra.mxu0 0.0
    %191 = vmatprep.subr.mxu0 0.0
    %192 = vmatpush1.msra.mxu0 0.0
    %193 = vmatprep.subr.mxu0 0.0
    %194 = vmatpush1.msra.mxu0 0.0
    %195 = vmatprep.subr.mxu0 0.0
    %196 = vmatpush1.msra.mxu0 0.0
    %197 = vmatprep.subr.mxu0 0.0
    %198 = vmatpush1.msra.mxu0 0.0
    %199 = vmatprep.subr.mxu0 0.0
    %200 = vmatpush1.msra.mxu0 0.0
    %201 = vmatprep.subr.mxu0 0.0
    %202 = vmatpush1.msra.mxu0 0.0
    %203 = vmatprep.subr.mxu0 0.0
    %204 = vmatpush1.msra.mxu0 0.0
    %205 = vmatprep.mubr.f32.mxu0 0.0
    %206 = vmatmul.mubr.f32.gmra.mrb[0].mxu0 %v93
    %v207 = vpop.f32.mrb[0].mxu0
    %v208 = vadd.f32 0.0, %v207
    %v209 = vpop.f32.mrb[0].mxu0
    %210 = vmatprep.mubr.f32.mxu0 0.0
    %211 = vmatmul.mubr.f32.gmra.mrb[0].mxu0 %v94
    %v212 = vpop.f32.mrb[0].mxu0
    %v213 = vadd.f32 0.0, %v212
    %v214 = vpop.f32.mrb[0].mxu0
    %215 = vmatprep.mubr.f32.mxu0 0.0
    %216 = vmatmul.mubr.f32.gmra.mrb[0].mxu0 %v95
    %v217 = vpop.f32.mrb[0].mxu0
    %v218 = vadd.f32 0.0, %v217
    %v219 = vpop.f32.mrb[0].mxu0
    %220 = vmatprep.mubr.f32.mxu0 0.0
    %221 = vmatmul.mubr.f32.gmra.mrb[0].mxu0 %v96
    %v222 = vpop.f32.mrb[0].mxu0
    %v223 = vadd.f32 0.0, %v222
    %v224 = vpop.f32.mrb[0].mxu0
    %225 = vmatprep.mubr.f32.mxu0 0.0
    %226 = vmatmul.mubr.f32.gmra.mrb[0].mxu0 %v97
    %v227 = vpop.f32.mrb[0].mxu0
    %v228 = vadd.f32 0.0, %v227
    %v229 = vpop.f32.mrb[0].mxu0
    %230 = vmatprep.mubr.f32.mxu0 0.0
    %231 = vmatmul.mubr.f32.gmra.mrb[0].mxu0 %v98
    %v232 = vpop.f32.mrb[0].mxu0
    %v233 = vadd.f32 0.0, %v232
    %v234 = vpop.f32.mrb[0].mxu0
    %235 = vmatprep.mubr.f32.mxu0 0.0
    %236 = vmatmul.mubr.f32.gmra.mrb[0].mxu0 %v99
    %v237 = vpop.f32.mrb[0].mxu0
    %v238 = vadd.f32 0.0, %v237
    %v239 = vpop.f32.mrb[0].mxu0
    %240 = vmatprep.mubr.f32.mxu0 0.0
    %241 = vmatmul.mubr.f32.gmra.mrb[0].mxu0 %v100
    %v242 = vpop.f32.mrb[0].mxu0
    %v243 = vadd.f32 0.0, %v242
    %v244 = vpop.f32.mrb[0].mxu0
    %245 = vmatprep.mubr.f32.mxu0 0.0
    %246 = vmatmul.mubr.f32.gmra.mrb[0].mxu0 %v101
    %v247 = vpop.f32.mrb[0].mxu0
    %v248 = vadd.f32 0.0, %v247
    %v249 = vpop.f32.mrb[0].mxu0
    %250 = vmatprep.mubr.f32.mxu0 0.0
    %251 = vmatmul.mubr.f32.gmra.mrb[0].mxu0 %v102
    %v252 = vpop.f32.mrb[0].mxu0
    %v253 = vadd.f32 0.0, %v252
    %v254 = vpop.f32.mrb[0].mxu0
    %255 = vmatprep.mubr.f32.mxu0 0.0
    %256 = vmatmul.mubr.f32.gmra.mrb[0].mxu0 %v103
    %v257 = vpop.f32.mrb[0].mxu0
    %v258 = vadd.f32 0.0, %v257
    %v259 = vpop.f32.mrb[0].mxu0
    %260 = vmatprep.mubr.f32.mxu0 0.0
    %261 = vmatmul.mubr.f32.gmra.mrb[0].mxu0 %v104
    %v262 = vpop.f32.mrb[0].mxu0
    %v263 = vadd.f32 0.0, %v262
    %v264 = vpop.f32.mrb[0].mxu0
    %265 = vmatprep.mubr.f32.mxu0 0.0
    %266 = vmatmul.mubr.f32.gmra.mrb[0].mxu0 %v105
    %v267 = vpop.f32.mrb[0].mxu0
    %v268 = vadd.f32 0.0, %v267
    %v269 = vpop.f32.mrb[0].mxu0
    %270 = vmatprep.mubr.f32.mxu0 0.0
    %271 = vmatmul.mubr.f32.gmra.mrb[0].mxu0 %v106
    %v272 = vpop.f32.mrb[0].mxu0
    %v273 = vadd.f32 0.0, %v272
    %v274 = vpop.f32.mrb[0].mxu0
    %275 = vmatprep.mubr.f32.mxu0 0.0
    %276 = vmatmul.mubr.f32.gmra.mrb[0].mxu0 %v107
    %v277 = vpop.f32.mrb[0].mxu0
    %v278 = vadd.f32 0.0, %v277
    %v279 = vpop.f32.mrb[0].mxu0
    %280 = vmatprep.mubr.f32.mxu0 0.0
    %281 = vmatmul.mubr.f32.gmra.mrb[0].mxu0 %v108
    %v282 = vpop.f32.mrb[0].mxu0
    %v283 = vadd.f32 0.0, %v282
    %v284 = vpop.f32.mrb[0].mxu0
    %285 = vdwg.mxu0
    %v286 = vadd.f32 %v109, %v208
    %v287 = vadd.f32 %v110, %v213
    %v288 = vadd.f32 %v111, %v218
    %v289 = vadd.f32 %v112, %v223
    %v290 = vadd.f32 %v113, %v228
    %v291 = vadd.f32 %v114, %v233
    %v292 = vadd.f32 %v115, %v238
    %v293 = vadd.f32 %v116, %v243
    %v294 = vadd.f32 %v117, %v248
    %v295 = vadd.f32 %v118, %v253
    %v296 = vadd.f32 %v119, %v258
    %v297 = vadd.f32 %v120, %v263
    %v298 = vadd.f32 %v121, %v268
    %v299 = vadd.f32 %v122, %v273
    %v300 = vadd.f32 %v123, %v278
    %v301 = vadd.f32 %v124, %v283
    %v302 = vld [vmem:[#allocation8] sm:$0xff]
    %v303 = vld [vmem:[#allocation8 + $0x8] sm:$0xff]
    %v304 = vld [vmem:[#allocation8 + $0x10] sm:$0xff]
    %v305 = vld [vmem:[#allocation8 + $0x18] sm:$0xff]
    %v306 = vld [vmem:[#allocation8 + $0x20] sm:$0xff]
    %v307 = vld [vmem:[#allocation8 + $0x28] sm:$0xff]
    %v308 = vld [vmem:[#allocation8 + $0x30] sm:$0xff]
    %v309 = vld [vmem:[#allocation8 + $0x38] sm:$0xff]
    %v310 = vld [vmem:[#allocation8 + $0x40] sm:$0xff]
    %v311 = vld [vmem:[#allocation8 + $0x48] sm:$0xff]
    %v312 = vld [vmem:[#allocation8 + $0x50] sm:$0xff]
    %v313 = vld [vmem:[#allocation8 + $0x58] sm:$0xff]
    %v314 = vld [vmem:[#allocation8 + $0x60] sm:$0xff]
    %v315 = vld [vmem:[#allocation8 + $0x68] sm:$0xff]
    %v316 = vld [vmem:[#allocation8 + $0x70] sm:$0xff]
    %v317 = vld [vmem:[#allocation8 + $0x78] sm:$0xff]
    %v318 = vld [vmem:[%s4] sm:$0x1]
    %v320 = vlaneseq
    %v321 = vshrl.u32 %v320, 7
    %v322 = vsub.s32 0, %v321
    %v323 = vrot.slane %v318, %v322
    %325 = vmatprep.subr.mxu0 0.0
    %326 = vmatpush1.msra.mxu0 %v302
    %327 = vmatprep.subr.mxu0 0.0
    %328 = vmatpush1.msra.mxu0 %v303
    %329 = vmatprep.subr.mxu0 0.0
    %330 = vmatpush1.msra.mxu0 %v304
    %331 = vmatprep.subr.mxu0 0.0
    %332 = vmatpush1.msra.mxu0 %v305
    %333 = vmatprep.subr.mxu0 0.0
    %334 = vmatpush1.msra.mxu0 %v306
    %335 = vmatprep.subr.mxu0 0.0
    %336 = vmatpush1.msra.mxu0 %v307
    %337 = vmatprep.subr.mxu0 0.0
    %338 = vmatpush1.msra.mxu0 %v308
    %339 = vmatprep.subr.mxu0 0.0
    %340 = vmatpush1.msra.mxu0 %v309
    %341 = vmatprep.subr.mxu0 0.0
    %342 = vmatpush1.msra.mxu0 %v310
    %343 = vmatprep.subr.mxu0 0.0
    %344 = vmatpush1.msra.mxu0 %v311
    %345 = vmatprep.subr.mxu0 0.0
    %346 = vmatpush1.msra.mxu0 %v312
    %347 = vmatprep.subr.mxu0 0.0
    %348 = vmatpush1.msra.mxu0 %v313
    %349 = vmatprep.subr.mxu0 0.0
    %350 = vmatpush1.msra.mxu0 %v314
    %351 = vmatprep.subr.mxu0 0.0
    %352 = vmatpush1.msra.mxu0 %v315
    %353 = vmatprep.subr.mxu0 0.0
    %354 = vmatpush1.msra.mxu0 %v316
    %355 = vmatprep.subr.mxu0 0.0
    %356 = vmatpush1.msra.mxu0 %v317
    %357 = vmatprep.subr.mxu0 0.0
    %358 = vmatpush1.msra.mxu0 0.0
    %359 = vmatprep.subr.mxu0 0.0
    %360 = vmatpush1.msra.mxu0 0.0
    %361 = vmatprep.subr.mxu0 0.0
    %362 = vmatpush1.msra.mxu0 0.0
    %363 = vmatprep.subr.mxu0 0.0
    %364 = vmatpush1.msra.mxu0 0.0
    %365 = vmatprep.subr.mxu0 0.0
    %366 = vmatpush1.msra.mxu0 0.0
    %367 = vmatprep.subr.mxu0 0.0
    %368 = vmatpush1.msra.mxu0 0.0
    %369 = vmatprep.subr.mxu0 0.0
    %370 = vmatpush1.msra.mxu0 0.0
    %371 = vmatprep.subr.mxu0 0.0
    %372 = vmatpush1.msra.mxu0 0.0
    %373 = vmatprep.subr.mxu0 0.0
    %374 = vmatpush1.msra.mxu0 0.0
    %375 = vmatprep.subr.mxu0 0.0
    %376 = vmatpush1.msra.mxu0 0.0
    %377 = vmatprep.subr.mxu0 0.0
    %378 = vmatpush1.msra.mxu0 0.0
    %379 = vmatprep.subr.mxu0 0.0
    %380 = vmatpush1.msra.mxu0 0.0
    %381 = vmatprep.subr.mxu0 0.0
    %382 = vmatpush1.msra.mxu0 0.0
    %383 = vmatprep.subr.mxu0 0.0
    %384 = vmatpush1.msra.mxu0 0.0
    %385 = vmatprep.subr.mxu0 0.0
    %386 = vmatpush1.msra.mxu0 0.0
    %387 = vmatprep.subr.mxu0 0.0
    %388 = vmatpush1.msra.mxu0 0.0
    %389 = vmatprep.mubr.f32.mxu0 0.0
    %390 = vmatmul.mubr.f32.gmra.mrb[0].mxu0 %v286
    %v391 = vpop.f32.mrb[0].mxu0
    %v392 = vadd.f32 %v323, %v391
    %v393 = vpop.f32.mrb[0].mxu0
    %394 = vmatprep.mubr.f32.mxu0 0.0
    %395 = vmatmul.mubr.f32.gmra.mrb[0].mxu0 %v287
    %v396 = vpop.f32.mrb[0].mxu0
    %v397 = vadd.f32 %v323, %v396
    %v398 = vpop.f32.mrb[0].mxu0
    %399 = vmatprep.mubr.f32.mxu0 0.0
    %400 = vmatmul.mubr.f32.gmra.mrb[0].mxu0 %v288
    %v401 = vpop.f32.mrb[0].mxu0
    %v402 = vadd.f32 %v323, %v401
    %v403 = vpop.f32.mrb[0].mxu0
    %404 = vmatprep.mubr.f32.mxu0 0.0
    %405 = vmatmul.mubr.f32.gmra.mrb[0].mxu0 %v289
    %v406 = vpop.f32.mrb[0].mxu0
    %v407 = vadd.f32 %v323, %v406
    %v408 = vpop.f32.mrb[0].mxu0
    %409 = vmatprep.mubr.f32.mxu0 0.0
    %410 = vmatmul.mubr.f32.gmra.mrb[0].mxu0 %v290
    %v411 = vpop.f32.mrb[0].mxu0
    %v412 = vadd.f32 %v323, %v411
    %v413 = vpop.f32.mrb[0].mxu0
    %414 = vmatprep.mubr.f32.mxu0 0.0
    %415 = vmatmul.mubr.f32.gmra.mrb[0].mxu0 %v291
    %v416 = vpop.f32.mrb[0].mxu0
    %v417 = vadd.f32 %v323, %v416
    %v418 = vpop.f32.mrb[0].mxu0
    %419 = vmatprep.mubr.f32.mxu0 0.0
    %420 = vmatmul.mubr.f32.gmra.mrb[0].mxu0 %v292
    %v421 = vpop.f32.mrb[0].mxu0
    %v422 = vadd.f32 %v323, %v421
    %v423 = vpop.f32.mrb[0].mxu0
    %424 = vmatprep.mubr.f32.mxu0 0.0
    %425 = vmatmul.mubr.f32.gmra.mrb[0].mxu0 %v293
    %v426 = vpop.f32.mrb[0].mxu0
    %v427 = vadd.f32 %v323, %v426
    %v428 = vpop.f32.mrb[0].mxu0
    %429 = vmatprep.mubr.f32.mxu0 0.0
    %430 = vmatmul.mubr.f32.gmra.mrb[0].mxu0 %v294
    %v431 = vpop.f32.mrb[0].mxu0
    %v432 = vadd.f32 %v323, %v431
    %v433 = vpop.f32.mrb[0].mxu0
    %434 = vmatprep.mubr.f32.mxu0 0.0
    %435 = vmatmul.mubr.f32.gmra.mrb[0].mxu0 %v295
    %v436 = vpop.f32.mrb[0].mxu0
    %v437 = vadd.f32 %v323, %v436
    %v438 = vpop.f32.mrb[0].mxu0
    %439 = vmatprep.mubr.f32.mxu0 0.0
    %440 = vmatmul.mubr.f32.gmra.mrb[0].mxu0 %v296
    %v441 = vpop.f32.mrb[0].mxu0
    %v442 = vadd.f32 %v323, %v441
    %v443 = vpop.f32.mrb[0].mxu0
    %444 = vmatprep.mubr.f32.mxu0 0.0
    %445 = vmatmul.mubr.f32.gmra.mrb[0].mxu0 %v297
    %v446 = vpop.f32.mrb[0].mxu0
    %v447 = vadd.f32 %v323, %v446
    %v448 = vpop.f32.mrb[0].mxu0
    %449 = vmatprep.mubr.f32.mxu0 0.0
    %450 = vmatmul.mubr.f32.gmra.mrb[0].mxu0 %v298
    %v451 = vpop.f32.mrb[0].mxu0
    %v452 = vadd.f32 %v323, %v451
    %v453 = vpop.f32.mrb[0].mxu0
    %454 = vmatprep.mubr.f32.mxu0 0.0
    %455 = vmatmul.mubr.f32.gmra.mrb[0].mxu0 %v299
    %v456 = vpop.f32.mrb[0].mxu0
    %v457 = vadd.f32 %v323, %v456
    %v458 = vpop.f32.mrb[0].mxu0
    %459 = vmatprep.mubr.f32.mxu0 0.0
    %460 = vmatmul.mubr.f32.gmra.mrb[0].mxu0 %v300
    %v461 = vpop.f32.mrb[0].mxu0
    %v462 = vadd.f32 %v323, %v461
    %v463 = vpop.f32.mrb[0].mxu0
    %464 = vmatprep.mubr.f32.mxu0 0.0
    %465 = vmatmul.mubr.f32.gmra.mrb[0].mxu0 %v301
    %v466 = vpop.f32.mrb[0].mxu0
    %v467 = vadd.f32 %v323, %v466
    %v468 = vpop.f32.mrb[0].mxu0
    %469 = vdwg.mxu0
    %v470 = vmax.f32 %v392, 0.0
    %v471 = vmax.f32 %v397, 0.0
    %v472 = vmax.f32 %v402, 0.0
    %v473 = vmax.f32 %v407, 0.0
    %v474 = vmax.f32 %v412, 0.0
    %v475 = vmax.f32 %v417, 0.0
    %v476 = vmax.f32 %v422, 0.0
    %v477 = vmax.f32 %v427, 0.0
    %v478 = vmax.f32 %v432, 0.0
    %v479 = vmax.f32 %v437, 0.0
    %v480 = vmax.f32 %v442, 0.0
    %v481 = vmax.f32 %v447, 0.0
    %v482 = vmax.f32 %v452, 0.0
    %v483 = vmax.f32 %v457, 0.0
    %v484 = vmax.f32 %v462, 0.0
    %v485 = vmax.f32 %v467, 0.0
    %v486 = vld [vmem:[#allocation10] sm:$0xff]
    %v487 = vld [vmem:[#allocation10 + $0x8] sm:$0xff]
    %v488 = vld [vmem:[#allocation10 + $0x10] sm:$0xff]
    %v489 = vld [vmem:[#allocation10 + $0x18] sm:$0xff]
    %v490 = vld [vmem:[#allocation10 + $0x20] sm:$0xff]
    %v491 = vld [vmem:[#allocation10 + $0x28] sm:$0xff]
    %v492 = vld [vmem:[#allocation10 + $0x30] sm:$0xff]
    %v493 = vld [vmem:[#allocation10 + $0x38] sm:$0xff]
    %v494 = vld [vmem:[#allocation10 + $0x40] sm:$0xff]
    %v495 = vld [vmem:[#allocation10 + $0x48] sm:$0xff]
    %v496 = vld [vmem:[#allocation10 + $0x50] sm:$0xff]
    %v497 = vld [vmem:[#allocation10 + $0x58] sm:$0xff]
    %v498 = vld [vmem:[#allocation10 + $0x60] sm:$0xff]
    %v499 = vld [vmem:[#allocation10 + $0x68] sm:$0xff]
    %v500 = vld [vmem:[#allocation10 + $0x70] sm:$0xff]
    %v501 = vld [vmem:[#allocation10 + $0x78] sm:$0xff]
    %v502 = vld [vmem:[%s6] sm:$0x1]
    %v504 = vlaneseq
    %v505 = vshrl.u32 %v504, 7
    %v506 = vsub.s32 0, %v505
    %v507 = vrot.slane %v502, %v506
    %509 = vmatprep.subr.mxu0 0.0
    %510 = vmatpush1.msra.mxu0 %v486
    %511 = vmatprep.subr.mxu0 0.0
    %512 = vmatpush1.msra.mxu0 %v487
    %513 = vmatprep.subr.mxu0 0.0
    %514 = vmatpush1.msra.mxu0 %v488
    %515 = vmatprep.subr.mxu0 0.0
    %516 = vmatpush1.msra.mxu0 %v489
    %517 = vmatprep.subr.mxu0 0.0
    %518 = vmatpush1.msra.mxu0 %v490
    %519 = vmatprep.subr.mxu0 0.0
    %520 = vmatpush1.msra.mxu0 %v491
    %521 = vmatprep.subr.mxu0 0.0
    %522 = vmatpush1.msra.mxu0 %v492
    %523 = vmatprep.subr.mxu0 0.0
    %524 = vmatpush1.msra.mxu0 %v493
    %525 = vmatprep.subr.mxu0 0.0
    %526 = vmatpush1.msra.mxu0 %v494
    %527 = vmatprep.subr.mxu0 0.0
    %528 = vmatpush1.msra.mxu0 %v495
    %529 = vmatprep.subr.mxu0 0.0
    %530 = vmatpush1.msra.mxu0 %v496
    %531 = vmatprep.subr.mxu0 0.0
    %532 = vmatpush1.msra.mxu0 %v497
    %533 = vmatprep.subr.mxu0 0.0
    %534 = vmatpush1.msra.mxu0 %v498
    %535 = vmatprep.subr.mxu0 0.0
    %536 = vmatpush1.msra.mxu0 %v499
    %537 = vmatprep.subr.mxu0 0.0
    %538 = vmatpush1.msra.mxu0 %v500
    %539 = vmatprep.subr.mxu0 0.0
    %540 = vmatpush1.msra.mxu0 %v501
    %541 = vmatprep.subr.mxu0 0.0
    %542 = vmatpush1.msra.mxu0 0.0
    %543 = vmatprep.subr.mxu0 0.0
    %544 = vmatpush1.msra.mxu0 0.0
    %545 = vmatprep.subr.mxu0 0.0
    %546 = vmatpush1.msra.mxu0 0.0
    %547 = vmatprep.subr.mxu0 0.0
    %548 = vmatpush1.msra.mxu0 0.0
    %549 = vmatprep.subr.mxu0 0.0
    %550 = vmatpush1.msra.mxu0 0.0
    %551 = vmatprep.subr.mxu0 0.0
    %552 = vmatpush1.msra.mxu0 0.0
    %553 = vmatprep.subr.mxu0 0.0
    %554 = vmatpush1.msra.mxu0 0.0
    %555 = vmatprep.subr.mxu0 0.0
    %556 = vmatpush1.msra.mxu0 0.0
    %557 = vmatprep.subr.mxu0 0.0
    %558 = vmatpush1.msra.mxu0 0.0
    %559 = vmatprep.subr.mxu0 0.0
    %560 = vmatpush1.msra.mxu0 0.0
    %561 = vmatprep.subr.mxu0 0.0
    %562 = vmatpush1.msra.mxu0 0.0
    %563 = vmatprep.subr.mxu0 0.0
    %564 = vmatpush1.msra.mxu0 0.0
    %565 = vmatprep.subr.mxu0 0.0
    %566 = vmatpush1.msra.mxu0 0.0
    %567 = vmatprep.subr.mxu0 0.0
    %568 = vmatpush1.msra.mxu0 0.0
    %569 = vmatprep.subr.mxu0 0.0
    %570 = vmatpush1.msra.mxu0 0.0
    %571 = vmatprep.subr.mxu0 0.0
    %572 = vmatpush1.msra.mxu0 0.0
    %573 = vmatprep.mubr.f32.mxu0 0.0
    %574 = vmatmul.mubr.f32.gmra.mrb[0].mxu0 %v470
    %v575 = vpop.f32.mrb[0].mxu0
    %v576 = vadd.f32 %v507, %v575
    %v577 = vpop.f32.mrb[0].mxu0
    %578 = vmatprep.mubr.f32.mxu0 0.0
    %579 = vmatmul.mubr.f32.gmra.mrb[0].mxu0 %v471
    %v580 = vpop.f32.mrb[0].mxu0
    %v581 = vadd.f32 %v507, %v580
    %v582 = vpop.f32.mrb[0].mxu0
    %583 = vmatprep.mubr.f32.mxu0 0.0
    %584 = vmatmul.mubr.f32.gmra.mrb[0].mxu0 %v472
    %v585 = vpop.f32.mrb[0].mxu0
    %v586 = vadd.f32 %v507, %v585
    %v587 = vpop.f32.mrb[0].mxu0
    %588 = vmatprep.mubr.f32.mxu0 0.0
    %589 = vmatmul.mubr.f32.gmra.mrb[0].mxu0 %v473
    %v590 = vpop.f32.mrb[0].mxu0
    %v591 = vadd.f32 %v507, %v590
    %v592 = vpop.f32.mrb[0].mxu0
    %593 = vmatprep.mubr.f32.mxu0 0.0
    %594 = vmatmul.mubr.f32.gmra.mrb[0].mxu0 %v474
    %v595 = vpop.f32.mrb[0].mxu0
    %v596 = vadd.f32 %v507, %v595
    %v597 = vpop.f32.mrb[0].mxu0
    %598 = vmatprep.mubr.f32.mxu0 0.0
    %599 = vmatmul.mubr.f32.gmra.mrb[0].mxu0 %v475
    %v600 = vpop.f32.mrb[0].mxu0
    %v601 = vadd.f32 %v507, %v600
    %v602 = vpop.f32.mrb[0].mxu0
    %603 = vmatprep.mubr.f32.mxu0 0.0
    %604 = vmatmul.mubr.f32.gmra.mrb[0].mxu0 %v476
    %v605 = vpop.f32.mrb[0].mxu0
    %v606 = vadd.f32 %v507, %v605
    %v607 = vpop.f32.mrb[0].mxu0
    %608 = vmatprep.mubr.f32.mxu0 0.0
    %609 = vmatmul.mubr.f32.gmra.mrb[0].mxu0 %v477
    %v610 = vpop.f32.mrb[0].mxu0
    %v611 = vadd.f32 %v507, %v610
    %v612 = vpop.f32.mrb[0].mxu0
    %613 = vmatprep.mubr.f32.mxu0 0.0
    %614 = vmatmul.mubr.f32.gmra.mrb[0].mxu0 %v478
    %v615 = vpop.f32.mrb[0].mxu0
    %v616 = vadd.f32 %v507, %v615
    %v617 = vpop.f32.mrb[0].mxu0
    %618 = vmatprep.mubr.f32.mxu0 0.0
    %619 = vmatmul.mubr.f32.gmra.mrb[0].mxu0 %v479
    %v620 = vpop.f32.mrb[0].mxu0
    %v621 = vadd.f32 %v507, %v620
    %v622 = vpop.f32.mrb[0].mxu0
    %623 = vmatprep.mubr.f32.mxu0 0.0
    %624 = vmatmul.mubr.f32.gmra.mrb[0].mxu0 %v480
    %v625 = vpop.f32.mrb[0].mxu0
    %v626 = vadd.f32 %v507, %v625
    %v627 = vpop.f32.mrb[0].mxu0
    %628 = vmatprep.mubr.f32.mxu0 0.0
    %629 = vmatmul.mubr.f32.gmra.mrb[0].mxu0 %v481
    %v630 = vpop.f32.mrb[0].mxu0
    %v631 = vadd.f32 %v507, %v630
    %v632 = vpop.f32.mrb[0].mxu0
    %633 = vmatprep.mubr.f32.mxu0 0.0
    %634 = vmatmul.mubr.f32.gmra.mrb[0].mxu0 %v482
    %v635 = vpop.f32.mrb[0].mxu0
    %v636 = vadd.f32 %v507, %v635
    %v637 = vpop.f32.mrb[0].mxu0
    %638 = vmatprep.mubr.f32.mxu0 0.0
    %639 = vmatmul.mubr.f32.gmra.mrb[0].mxu0 %v483
    %v640 = vpop.f32.mrb[0].mxu0
    %v641 = vadd.f32 %v507, %v640
    %v642 = vpop.f32.mrb[0].mxu0
    %643 = vmatprep.mubr.f32.mxu0 0.0
    %644 = vmatmul.mubr.f32.gmra.mrb[0].mxu0 %v484
    %v645 = vpop.f32.mrb[0].mxu0
    %v646 = vadd.f32 %v507, %v645
    %v647 = vpop.f32.mrb[0].mxu0
    %648 = vmatprep.mubr.f32.mxu0 0.0
    %649 = vmatmul.mubr.f32.gmra.mrb[0].mxu0 %v485
    %v650 = vpop.f32.mrb[0].mxu0
    %v651 = vadd.f32 %v507, %v650
    %v652 = vpop.f32.mrb[0].mxu0
    %653 = vdwg.mxu0
    %v654 = vmax.f32 %v576, 0.0
    %v655 = vmax.f32 %v581, 0.0
    %v656 = vmax.f32 %v586, 0.0
    %v657 = vmax.f32 %v591, 0.0
    %v658 = vmax.f32 %v596, 0.0
    %v659 = vmax.f32 %v601, 0.0
    %v660 = vmax.f32 %v606, 0.0
    %v661 = vmax.f32 %v611, 0.0
    %v662 = vmax.f32 %v616, 0.0
    %v663 = vmax.f32 %v621, 0.0
    %v664 = vmax.f32 %v626, 0.0
    %v665 = vmax.f32 %v631, 0.0
    %v666 = vmax.f32 %v636, 0.0
    %v667 = vmax.f32 %v641, 0.0
    %v668 = vmax.f32 %v646, 0.0
    %v669 = vmax.f32 %v651, 0.0
    %v670 = vadd.f32 %v654, %v109
    %v671 = vadd.f32 %v655, %v110
    %v672 = vadd.f32 %v656, %v111
    %v673 = vadd.f32 %v657, %v112
    %v674 = vadd.f32 %v658, %v113
    %v675 = vadd.f32 %v659, %v114
    %v676 = vadd.f32 %v660, %v115
    %v677 = vadd.f32 %v661, %v116
    %v678 = vadd.f32 %v662, %v117
    %v679 = vadd.f32 %v663, %v118
    %v680 = vadd.f32 %v664, %v119
    %v681 = vadd.f32 %v665, %v120
    %v682 = vadd.f32 %v666, %v121
    %v683 = vadd.f32 %v667, %v122
    %v684 = vadd.f32 %v668, %v123
    %v685 = vadd.f32 %v669, %v124
    %v686 = vmax.f32 %v670, 0.0
    %v687 = vmax.f32 %v671, 0.0
    %v688 = vmax.f32 %v672, 0.0
    %v689 = vmax.f32 %v673, 0.0
    %v690 = vmax.f32 %v674, 0.0
    %v691 = vmax.f32 %v675, 0.0
    %v692 = vmax.f32 %v676, 0.0
    %v693 = vmax.f32 %v677, 0.0
    %v694 = vmax.f32 %v678, 0.0
    %v695 = vmax.f32 %v679, 0.0
    %v696 = vmax.f32 %v680, 0.0
    %v697 = vmax.f32 %v681, 0.0
    %v698 = vmax.f32 %v682, 0.0
    %v699 = vmax.f32 %v683, 0.0
    %v700 = vmax.f32 %v684, 0.0
    %v701 = vmax.f32 %v685, 0.0
    %702 = vmatprep.subr.mxu0 0.0
    %703 = vmatpush1.msra.mxu0 %v686
    %704 = vmatprep.subr.mxu0 0.0
    %705 = vmatpush1.msra.mxu0 %v687
    %706 = vmatprep.subr.mxu0 0.0
    %707 = vmatpush1.msra.mxu0 %v688
    %708 = vmatprep.subr.mxu0 0.0
    %709 = vmatpush1.msra.mxu0 %v689
    %710 = vmatprep.subr.mxu0 0.0
    %711 = vmatpush1.msra.mxu0 %v690
    %712 = vmatprep.subr.mxu0 0.0
    %713 = vmatpush1.msra.mxu0 %v691
    %714 = vmatprep.subr.mxu0 0.0
    %715 = vmatpush1.msra.mxu0 %v692
    %716 = vmatprep.subr.mxu0 0.0
    %717 = vmatpush1.msra.mxu0 %v693
    %718 = vmatprep.subr.mxu0 0.0
    %719 = vmatpush1.msra.mxu0 %v694
    %720 = vmatprep.subr.mxu0 0.0
    %721 = vmatpush1.msra.mxu0 %v695
    %722 = vmatprep.subr.mxu0 0.0
    %723 = vmatpush1.msra.mxu0 %v696
    %724 = vmatprep.subr.mxu0 0.0
    %725 = vmatpush1.msra.mxu0 %v697
    %726 = vmatprep.subr.mxu0 0.0
    %727 = vmatpush1.msra.mxu0 %v698
    %728 = vmatprep.subr.mxu0 0.0
    %729 = vmatpush1.msra.mxu0 %v699
    %730 = vmatprep.subr.mxu0 0.0
    %731 = vmatpush1.msra.mxu0 %v700
    %732 = vmatprep.subr.mxu0 0.0
    %733 = vmatpush1.msra.mxu0 %v701
    %734 = vmatprep.subr.mxu0 0.0
    %735 = vmatpush1.msra.mxu0 0.0
    %736 = vmatprep.subr.mxu0 0.0
    %737 = vmatpush1.msra.mxu0 0.0
    %738 = vmatprep.subr.mxu0 0.0
    %739 = vmatpush1.msra.mxu0 0.0
    %740 = vmatprep.subr.mxu0 0.0
    %741 = vmatpush1.msra.mxu0 0.0
    %742 = vmatprep.subr.mxu0 0.0
    %743 = vmatpush1.msra.mxu0 0.0
    %744 = vmatprep.subr.mxu0 0.0
    %745 = vmatpush1.msra.mxu0 0.0
    %746 = vmatprep.subr.mxu0 0.0
    %747 = vmatpush1.msra.mxu0 0.0
    %748 = vmatprep.subr.mxu0 0.0
    %749 = vmatpush1.msra.mxu0 0.0
    %750 = vmatprep.subr.mxu0 0.0
    %751 = vmatpush1.msra.mxu0 0.0
    %752 = vmatprep.subr.mxu0 0.0
    %753 = vmatpush1.msra.mxu0 0.0
    %754 = vmatprep.subr.mxu0 0.0
    %755 = vmatpush1.msra.mxu0 0.0
    %756 = vmatprep.subr.mxu0 0.0
    %757 = vmatpush1.msra.mxu0 0.0
    %758 = vmatprep.subr.mxu0 0.0
    %759 = vmatpush1.msra.mxu0 0.0
    %760 = vmatprep.subr.mxu0 0.0
    %761 = vmatpush1.msra.mxu0 0.0
    %762 = vmatprep.subr.mxu0 0.0
    %763 = vmatpush1.msra.mxu0 0.0
    %764 = vmatprep.subr.mxu0 0.0
    %765 = vmatpush1.msra.mxu0 0.0
    %766 = vmatprep.mubr.f32.mxu0 0.0
    %767 = vmatmul.mubr.f32.gmra.mrb[0].mxu0 %v93
    %v768 = vpop.f32.mrb[0].mxu0
    %v769 = vadd.f32 0.0, %v768
    %v770 = vpop.f32.mrb[0].mxu0
    %771 = vmatprep.mubr.f32.mxu0 0.0
    %772 = vmatmul.mubr.f32.gmra.mrb[0].mxu0 %v94
    %v773 = vpop.f32.mrb[0].mxu0
    %v774 = vadd.f32 0.0, %v773
    %v775 = vpop.f32.mrb[0].mxu0
    %776 = vmatprep.mubr.f32.mxu0 0.0
    %777 = vmatmul.mubr.f32.gmra.mrb[0].mxu0 %v95
    %v778 = vpop.f32.mrb[0].mxu0
    %v779 = vadd.f32 0.0, %v778
    %v780 = vpop.f32.mrb[0].mxu0
    %781 = vmatprep.mubr.f32.mxu0 0.0
    %782 = vmatmul.mubr.f32.gmra.mrb[0].mxu0 %v96
    %v783 = vpop.f32.mrb[0].mxu0
    %v784 = vadd.f32 0.0, %v783
    %v785 = vpop.f32.mrb[0].mxu0
    %786 = vmatprep.mubr.f32.mxu0 0.0
    %787 = vmatmul.mubr.f32.gmra.mrb[0].mxu0 %v97
    %v788 = vpop.f32.mrb[0].mxu0
    %v789 = vadd.f32 0.0, %v788
    %v790 = vpop.f32.mrb[0].mxu0
    %791 = vmatprep.mubr.f32.mxu0 0.0
    %792 = vmatmul.mubr.f32.gmra.mrb[0].mxu0 %v98
    %v793 = vpop.f32.mrb[0].mxu0
    %v794 = vadd.f32 0.0, %v793
    %v795 = vpop.f32.mrb[0].mxu0
    %796 = vmatprep.mubr.f32.mxu0 0.0
    %797 = vmatmul.mubr.f32.gmra.mrb[0].mxu0 %v99
    %v798 = vpop.f32.mrb[0].mxu0
    %v799 = vadd.f32 0.0, %v798
    %v800 = vpop.f32.mrb[0].mxu0
    %801 = vmatprep.mubr.f32.mxu0 0.0
    %802 = vmatmul.mubr.f32.gmra.mrb[0].mxu0 %v100
    %v803 = vpop.f32.mrb[0].mxu0
    %v804 = vadd.f32 0.0, %v803
    %v805 = vpop.f32.mrb[0].mxu0
    %806 = vmatprep.mubr.f32.mxu0 0.0
    %807 = vmatmul.mubr.f32.gmra.mrb[0].mxu0 %v101
    %v808 = vpop.f32.mrb[0].mxu0
    %v809 = vadd.f32 0.0, %v808
    %v810 = vpop.f32.mrb[0].mxu0
    %811 = vmatprep.mubr.f32.mxu0 0.0
    %812 = vmatmul.mubr.f32.gmra.mrb[0].mxu0 %v102
    %v813 = vpop.f32.mrb[0].mxu0
    %v814 = vadd.f32 0.0, %v813
    %v815 = vpop.f32.mrb[0].mxu0
    %816 = vmatprep.mubr.f32.mxu0 0.0
    %817 = vmatmul.mubr.f32.gmra.mrb[0].mxu0 %v103
    %v818 = vpop.f32.mrb[0].mxu0
    %v819 = vadd.f32 0.0, %v818
    %v820 = vpop.f32.mrb[0].mxu0
    %821 = vmatprep.mubr.f32.mxu0 0.0
    %822 = vmatmul.mubr.f32.gmra.mrb[0].mxu0 %v104
    %v823 = vpop.f32.mrb[0].mxu0
    %v824 = vadd.f32 0.0, %v823
    %v825 = vpop.f32.mrb[0].mxu0
    %826 = vmatprep.mubr.f32.mxu0 0.0
    %827 = vmatmul.mubr.f32.gmra.mrb[0].mxu0 %v105
    %v828 = vpop.f32.mrb[0].mxu0
    %v829 = vadd.f32 0.0, %v828
    %v830 = vpop.f32.mrb[0].mxu0
    %831 = vmatprep.mubr.f32.mxu0 0.0
    %832 = vmatmul.mubr.f32.gmra.mrb[0].mxu0 %v106
    %v833 = vpop.f32.mrb[0].mxu0
    %v834 = vadd.f32 0.0, %v833
    %v835 = vpop.f32.mrb[0].mxu0
    %836 = vmatprep.mubr.f32.mxu0 0.0
    %837 = vmatmul.mubr.f32.gmra.mrb[0].mxu0 %v107
    %v838 = vpop.f32.mrb[0].mxu0
    %v839 = vadd.f32 0.0, %v838
    %v840 = vpop.f32.mrb[0].mxu0
    %841 = vmatprep.mubr.f32.mxu0 0.0
    %842 = vmatmul.mubr.f32.gmra.mrb[0].mxu0 %v108
    %v843 = vpop.f32.mrb[0].mxu0
    %v844 = vadd.f32 0.0, %v843
    %v845 = vpop.f32.mrb[0].mxu0
    %846 = vdwg.mxu0
    %v847 = vadd.f32 %v670, %v769
    %v848 = vadd.f32 %v671, %v774
    %v849 = vadd.f32 %v672, %v779
    %v850 = vadd.f32 %v673, %v784
    %v851 = vadd.f32 %v674, %v789
    %v852 = vadd.f32 %v675, %v794
    %v853 = vadd.f32 %v676, %v799
    %v854 = vadd.f32 %v677, %v804
    %v855 = vadd.f32 %v678, %v809
    %v856 = vadd.f32 %v679, %v814
    %v857 = vadd.f32 %v680, %v819
    %v858 = vadd.f32 %v681, %v824
    %v859 = vadd.f32 %v682, %v829
    %v860 = vadd.f32 %v683, %v834
    %v861 = vadd.f32 %v684, %v839
    %v862 = vadd.f32 %v685, %v844
    %s863 = scalar_lea.vmem [#allocation8], 128
    %v864 = vld [vmem:[%s863] sm:$0xff]
    %v865 = vld [vmem:[%s863 + $0x8] sm:$0xff]
    %v866 = vld [vmem:[%s863 + $0x10] sm:$0xff]
    %v867 = vld [vmem:[%s863 + $0x18] sm:$0xff]
    %v868 = vld [vmem:[%s863 + $0x20] sm:$0xff]
    %v869 = vld [vmem:[%s863 + $0x28] sm:$0xff]
    %v870 = vld [vmem:[%s863 + $0x30] sm:$0xff]
    %v871 = vld [vmem:[%s863 + $0x38] sm:$0xff]
    %v872 = vld [vmem:[%s863 + $0x40] sm:$0xff]
    %v873 = vld [vmem:[%s863 + $0x48] sm:$0xff]
    %v874 = vld [vmem:[%s863 + $0x50] sm:$0xff]
    %v875 = vld [vmem:[%s863 + $0x58] sm:$0xff]
    %v876 = vld [vmem:[%s863 + $0x60] sm:$0xff]
    %v877 = vld [vmem:[%s863 + $0x68] sm:$0xff]
    %v878 = vld [vmem:[%s863 + $0x70] sm:$0xff]
    %v879 = vld [vmem:[%s863 + $0x78] sm:$0xff]
    %s880 = scalar_lea.vmem %s4, 1
    %v881 = vld [vmem:[%s880] sm:$0x1]
    %v883 = vlaneseq
    %v884 = vshrl.u32 %v883, 7
    %v885 = vsub.s32 0, %v884
    %v886 = vrot.slane %v881, %v885
    %888 = vmatprep.subr.mxu0 0.0
    %889 = vmatpush1.msra.mxu0 %v864
    %890 = vmatprep.subr.mxu0 0.0
    %891 = vmatpush1.msra.mxu0 %v865
    %892 = vmatprep.subr.mxu0 0.0
    %893 = vmatpush1.msra.mxu0 %v866
    %894 = vmatprep.subr.mxu0 0.0
    %895 = vmatpush1.msra.mxu0 %v867
    %896 = vmatprep.subr.mxu0 0.0
    %897 = vmatpush1.msra.mxu0 %v868
    %898 = vmatprep.subr.mxu0 0.0
    %899 = vmatpush1.msra.mxu0 %v869
    %900 = vmatprep.subr.mxu0 0.0
    %901 = vmatpush1.msra.mxu0 %v870
    %902 = vmatprep.subr.mxu0 0.0
    %903 = vmatpush1.msra.mxu0 %v871
    %904 = vmatprep.subr.mxu0 0.0
    %905 = vmatpush1.msra.mxu0 %v872
    %906 = vmatprep.subr.mxu0 0.0
    %907 = vmatpush1.msra.mxu0 %v873
    %908 = vmatprep.subr.mxu0 0.0
    %909 = vmatpush1.msra.mxu0 %v874
    %910 = vmatprep.subr.mxu0 0.0
    %911 = vmatpush1.msra.mxu0 %v875
    %912 = vmatprep.subr.mxu0 0.0
    %913 = vmatpush1.msra.mxu0 %v876
    %914 = vmatprep.subr.mxu0 0.0
    %915 = vmatpush1.msra.mxu0 %v877
    %916 = vmatprep.subr.mxu0 0.0
    %917 = vmatpush1.msra.mxu0 %v878
    %918 = vmatprep.subr.mxu0 0.0
    %919 = vmatpush1.msra.mxu0 %v879
    %920 = vmatprep.subr.mxu0 0.0
    %921 = vmatpush1.msra.mxu0 0.0
    %922 = vmatprep.subr.mxu0 0.0
    %923 = vmatpush1.msra.mxu0 0.0
    %924 = vmatprep.subr.mxu0 0.0
    %925 = vmatpush1.msra.mxu0 0.0
    %926 = vmatprep.subr.mxu0 0.0
    %927 = vmatpush1.msra.mxu0 0.0
    %928 = vmatprep.subr.mxu0 0.0
    %929 = vmatpush1.msra.mxu0 0.0
    %930 = vmatprep.subr.mxu0 0.0
    %931 = vmatpush1.msra.mxu0 0.0
    %932 = vmatprep.subr.mxu0 0.0
    %933 = vmatpush1.msra.mxu0 0.0
    %934 = vmatprep.subr.mxu0 0.0
    %935 = vmatpush1.msra.mxu0 0.0
    %936 = vmatprep.subr.mxu0 0.0
    %937 = vmatpush1.msra.mxu0 0.0
    %938 = vmatprep.subr.mxu0 0.0
    %939 = vmatpush1.msra.mxu0 0.0
    %940 = vmatprep.subr.mxu0 0.0
    %941 = vmatpush1.msra.mxu0 0.0
    %942 = vmatprep.subr.mxu0 0.0
    %943 = vmatpush1.msra.mxu0 0.0
    %944 = vmatprep.subr.mxu0 0.0
    %945 = vmatpush1.msra.mxu0 0.0
    %946 = vmatprep.subr.mxu0 0.0
    %947 = vmatpush1.msra.mxu0 0.0
    %948 = vmatprep.subr.mxu0 0.0
    %949 = vmatpush1.msra.mxu0 0.0
    %950 = vmatprep.subr.mxu0 0.0
    %951 = vmatpush1.msra.mxu0 0.0
    %952 = vmatprep.mubr.f32.mxu0 0.0
    %953 = vmatmul.mubr.f32.gmra.mrb[0].mxu0 %v847
    %v954 = vpop.f32.mrb[0].mxu0
    %v955 = vadd.f32 %v886, %v954
    %v956 = vpop.f32.mrb[0].mxu0
    %957 = vmatprep.mubr.f32.mxu0 0.0
    %958 = vmatmul.mubr.f32.gmra.mrb[0].mxu0 %v848
    %v959 = vpop.f32.mrb[0].mxu0
    %v960 = vadd.f32 %v886, %v959
    %v961 = vpop.f32.mrb[0].mxu0
    %962 = vmatprep.mubr.f32.mxu0 0.0
    %963 = vmatmul.mubr.f32.gmra.mrb[0].mxu0 %v849
    %v964 = vpop.f32.mrb[0].mxu0
    %v965 = vadd.f32 %v886, %v964
    %v966 = vpop.f32.mrb[0].mxu0
    %967 = vmatprep.mubr.f32.mxu0 0.0
    %968 = vmatmul.mubr.f32.gmra.mrb[0].mxu0 %v850
    %v969 = vpop.f32.mrb[0].mxu0
    %v970 = vadd.f32 %v886, %v969
    %v971 = vpop.f32.mrb[0].mxu0
    %972 = vmatprep.mubr.f32.mxu0 0.0
    %973 = vmatmul.mubr.f32.gmra.mrb[0].mxu0 %v851
    %v974 = vpop.f32.mrb[0].mxu0
    %v975 = vadd.f32 %v886, %v974
    %v976 = vpop.f32.mrb[0].mxu0
    %977 = vmatprep.mubr.f32.mxu0 0.0
    %978 = vmatmul.mubr.f32.gmra.mrb[0].mxu0 %v852
    %v979 = vpop.f32.mrb[0].mxu0
    %v980 = vadd.f32 %v886, %v979
    %v981 = vpop.f32.mrb[0].mxu0
    %982 = vmatprep.mubr.f32.mxu0 0.0
    %983 = vmatmul.mubr.f32.gmra.mrb[0].mxu0 %v853
    %v984 = vpop.f32.mrb[0].mxu0
    %v985 = vadd.f32 %v886, %v984
    %v986 = vpop.f32.mrb[0].mxu0
    %987 = vmatprep.mubr.f32.mxu0 0.0
    %988 = vmatmul.mubr.f32.gmra.mrb[0].mxu0 %v854
    %v989 = vpop.f32.mrb[0].mxu0
    %v990 = vadd.f32 %v886, %v989
    %v991 = vpop.f32.mrb[0].mxu0
    %992 = vmatprep.mubr.f32.mxu0 0.0
    %993 = vmatmul.mubr.f32.gmra.mrb[0].mxu0 %v855
    %v994 = vpop.f32.mrb[0].mxu0
    %v995 = vadd.f32 %v886, %v994
    %v996 = vpop.f32.mrb[0].mxu0
    %997 = vmatprep.mubr.f32.mxu0 0.0
    %998 = vmatmul.mubr.f32.gmra.mrb[0].mxu0 %v856
    %v999 = vpop.f32.mrb[0].mxu0
    %v1000 = vadd.f32 %v886, %v999
    %v1001 = vpop.f32.mrb[0].mxu0
    %1002 = vmatprep.mubr.f32.mxu0 0.0
    %1003 = vmatmul.mubr.f32.gmra.mrb[0].mxu0 %v857
    %v1004 = vpop.f32.mrb[0].mxu0
    %v1005 = vadd.f32 %v886, %v1004
    %v1006 = vpop.f32.mrb[0].mxu0
    %1007 = vmatprep.mubr.f32.mxu0 0.0
    %1008 = vmatmul.mubr.f32.gmra.mrb[0].mxu0 %v858
    %v1009 = vpop.f32.mrb[0].mxu0
    %v1010 = vadd.f32 %v886, %v1009
    %v1011 = vpop.f32.mrb[0].mxu0
    %1012 = vmatprep.mubr.f32.mxu0 0.0
    %1013 = vmatmul.mubr.f32.gmra.mrb[0].mxu0 %v859
    %v1014 = vpop.f32.mrb[0].mxu0
    %v1015 = vadd.f32 %v886, %v1014
    %v1016 = vpop.f32.mrb[0].mxu0
    %1017 = vmatprep.mubr.f32.mxu0 0.0
    %1018 = vmatmul.mubr.f32.gmra.mrb[0].mxu0 %v860
    %v1019 = vpop.f32.mrb[0].mxu0
    %v1020 = vadd.f32 %v886, %v1019
    %v1021 = vpop.f32.mrb[0].mxu0
    %1022 = vmatprep.mubr.f32.mxu0 0.0
    %1023 = vmatmul.mubr.f32.gmra.mrb[0].mxu0 %v861
    %v1024 = vpop.f32.mrb[0].mxu0
    %v1025 = vadd.f32 %v886, %v1024
    %v1026 = vpop.f32.mrb[0].mxu0
    %1027 = vmatprep.mubr.f32.mxu0 0.0
    %1028 = vmatmul.mubr.f32.gmra.mrb[0].mxu0 %v862
    %v1029 = vpop.f32.mrb[0].mxu0
    %v1030 = vadd.f32 %v886, %v1029
    %v1031 = vpop.f32.mrb[0].mxu0
    %1032 = vdwg.mxu0
    %v1033 = vmax.f32 %v955, 0.0
    %v1034 = vmax.f32 %v960, 0.0
    %v1035 = vmax.f32 %v965, 0.0
    %v1036 = vmax.f32 %v970, 0.0
    %v1037 = vmax.f32 %v975, 0.0
    %v1038 = vmax.f32 %v980, 0.0
    %v1039 = vmax.f32 %v985, 0.0
    %v1040 = vmax.f32 %v990, 0.0
    %v1041 = vmax.f32 %v995, 0.0
    %v1042 = vmax.f32 %v1000, 0.0
    %v1043 = vmax.f32 %v1005, 0.0
    %v1044 = vmax.f32 %v1010, 0.0
    %v1045 = vmax.f32 %v1015, 0.0
    %v1046 = vmax.f32 %v1020, 0.0
    %v1047 = vmax.f32 %v1025, 0.0
    %v1048 = vmax.f32 %v1030, 0.0
    %s1049 = scalar_lea.vmem [#allocation10], 128
    %v1050 = vld [vmem:[%s1049] sm:$0xff]
    %v1051 = vld [vmem:[%s1049 + $0x8] sm:$0xff]
    %v1052 = vld [vmem:[%s1049 + $0x10] sm:$0xff]
    %v1053 = vld [vmem:[%s1049 + $0x18] sm:$0xff]
    %v1054 = vld [vmem:[%s1049 + $0x20] sm:$0xff]
    %v1055 = vld [vmem:[%s1049 + $0x28] sm:$0xff]
    %v1056 = vld [vmem:[%s1049 + $0x30] sm:$0xff]
    %v1057 = vld [vmem:[%s1049 + $0x38] sm:$0xff]
    %v1058 = vld [vmem:[%s1049 + $0x40] sm:$0xff]
    %v1059 = vld [vmem:[%s1049 + $0x48] sm:$0xff]
    %v1060 = vld [vmem:[%s1049 + $0x50] sm:$0xff]
    %v1061 = vld [vmem:[%s1049 + $0x58] sm:$0xff]
    %v1062 = vld [vmem:[%s1049 + $0x60] sm:$0xff]
    %v1063 = vld [vmem:[%s1049 + $0x68] sm:$0xff]
    %v1064 = vld [vmem:[%s1049 + $0x70] sm:$0xff]
    %v1065 = vld [vmem:[%s1049 + $0x78] sm:$0xff]
    %s1066 = scalar_lea.vmem %s6, 1
    %v1067 = vld [vmem:[%s1066] sm:$0x1]
    %v1069 = vlaneseq
    %v1070 = vshrl.u32 %v1069, 7
    %v1071 = vsub.s32 0, %v1070
    %v1072 = vrot.slane %v1067, %v1071
    %1074 = vmatprep.subr.mxu0 0.0
    %1075 = vmatpush1.msra.mxu0 %v1050
    %1076 = vmatprep.subr.mxu0 0.0
    %1077 = vmatpush1.msra.mxu0 %v1051
    %1078 = vmatprep.subr.mxu0 0.0
    %1079 = vmatpush1.msra.mxu0 %v1052
    %1080 = vmatprep.subr.mxu0 0.0
    %1081 = vmatpush1.msra.mxu0 %v1053
    %1082 = vmatprep.subr.mxu0 0.0
    %1083 = vmatpush1.msra.mxu0 %v1054
    %1084 = vmatprep.subr.mxu0 0.0
    %1085 = vmatpush1.msra.mxu0 %v1055
    %1086 = vmatprep.subr.mxu0 0.0
    %1087 = vmatpush1.msra.mxu0 %v1056
    %1088 = vmatprep.subr.mxu0 0.0
    %1089 = vmatpush1.msra.mxu0 %v1057
    %1090 = vmatprep.subr.mxu0 0.0
    %1091 = vmatpush1.msra.mxu0 %v1058
    %1092 = vmatprep.subr.mxu0 0.0
    %1093 = vmatpush1.msra.mxu0 %v1059
    %1094 = vmatprep.subr.mxu0 0.0
    %1095 = vmatpush1.msra.mxu0 %v1060
    %1096 = vmatprep.subr.mxu0 0.0
    %1097 = vmatpush1.msra.mxu0 %v1061
    %1098 = vmatprep.subr.mxu0 0.0
    %1099 = vmatpush1.msra.mxu0 %v1062
    %1100 = vmatprep.subr.mxu0 0.0
    %1101 = vmatpush1.msra.mxu0 %v1063
    %1102 = vmatprep.subr.mxu0 0.0
    %1103 = vmatpush1.msra.mxu0 %v1064
    %1104 = vmatprep.subr.mxu0 0.0
    %1105 = vmatpush1.msra.mxu0 %v1065
    %1106 = vmatprep.subr.mxu0 0.0
    %1107 = vmatpush1.msra.mxu0 0.0
    %1108 = vmatprep.subr.mxu0 0.0
    %1109 = vmatpush1.msra.mxu0 0.0
    %1110 = vmatprep.subr.mxu0 0.0
    %1111 = vmatpush1.msra.mxu0 0.0
    %1112 = vmatprep.subr.mxu0 0.0
    %1113 = vmatpush1.msra.mxu0 0.0
    %1114 = vmatprep.subr.mxu0 0.0
    %1115 = vmatpush1.msra.mxu0 0.0
    %1116 = vmatprep.subr.mxu0 0.0
    %1117 = vmatpush1.msra.mxu0 0.0
    %1118 = vmatprep.subr.mxu0 0.0
    %1119 = vmatpush1.msra.mxu0 0.0
    %1120 = vmatprep.subr.mxu0 0.0
    %1121 = vmatpush1.msra.mxu0 0.0
    %1122 = vmatprep.subr.mxu0 0.0
    %1123 = vmatpush1.msra.mxu0 0.0
    %1124 = vmatprep.subr.mxu0 0.0
    %1125 = vmatpush1.msra.mxu0 0.0
    %1126 = vmatprep.subr.mxu0 0.0
    %1127 = vmatpush1.msra.mxu0 0.0
    %1128 = vmatprep.subr.mxu0 0.0
    %1129 = vmatpush1.msra.mxu0 0.0
    %1130 = vmatprep.subr.mxu0 0.0
    %1131 = vmatpush1.msra.mxu0 0.0
    %1132 = vmatprep.subr.mxu0 0.0
    %1133 = vmatpush1.msra.mxu0 0.0
    %1134 = vmatprep.subr.mxu0 0.0
    %1135 = vmatpush1.msra.mxu0 0.0
    %1136 = vmatprep.subr.mxu0 0.0
    %1137 = vmatpush1.msra.mxu0 0.0
    %1138 = vmatprep.mubr.f32.mxu0 0.0
    %1139 = vmatmul.mubr.f32.gmra.mrb[0].mxu0 %v1033
    %v1140 = vpop.f32.mrb[0].mxu0
    %v1141 = vadd.f32 %v1072, %v1140
    %v1142 = vpop.f32.mrb[0].mxu0
    %1143 = vmatprep.mubr.f32.mxu0 0.0
    %1144 = vmatmul.mubr.f32.gmra.mrb[0].mxu0 %v1034
    %v1145 = vpop.f32.mrb[0].mxu0
    %v1146 = vadd.f32 %v1072, %v1145
    %v1147 = vpop.f32.mrb[0].mxu0
    %1148 = vmatprep.mubr.f32.mxu0 0.0
    %1149 = vmatmul.mubr.f32.gmra.mrb[0].mxu0 %v1035
    %v1150 = vpop.f32.mrb[0].mxu0
    %v1151 = vadd.f32 %v1072, %v1150
    %v1152 = vpop.f32.mrb[0].mxu0
    %1153 = vmatprep.mubr.f32.mxu0 0.0
    %1154 = vmatmul.mubr.f32.gmra.mrb[0].mxu0 %v1036
    %v1155 = vpop.f32.mrb[0].mxu0
    %v1156 = vadd.f32 %v1072, %v1155
    %v1157 = vpop.f32.mrb[0].mxu0
    %1158 = vmatprep.mubr.f32.mxu0 0.0
    %1159 = vmatmul.mubr.f32.gmra.mrb[0].mxu0 %v1037
    %v1160 = vpop.f32.mrb[0].mxu0
    %v1161 = vadd.f32 %v1072, %v1160
    %v1162 = vpop.f32.mrb[0].mxu0
    %1163 = vmatprep.mubr.f32.mxu0 0.0
    %1164 = vmatmul.mubr.f32.gmra.mrb[0].mxu0 %v1038
    %v1165 = vpop.f32.mrb[0].mxu0
    %v1166 = vadd.f32 %v1072, %v1165
    %v1167 = vpop.f32.mrb[0].mxu0
    %1168 = vmatprep.mubr.f32.mxu0 0.0
    %1169 = vmatmul.mubr.f32.gmra.mrb[0].mxu0 %v1039
    %v1170 = vpop.f32.mrb[0].mxu0
    %v1171 = vadd.f32 %v1072, %v1170
    %v1172 = vpop.f32.mrb[0].mxu0
    %1173 = vmatprep.mubr.f32.mxu0 0.0
    %1174 = vmatmul.mubr.f32.gmra.mrb[0].mxu0 %v1040
    %v1175 = vpop.f32.mrb[0].mxu0
    %v1176 = vadd.f32 %v1072, %v1175
    %v1177 = vpop.f32.mrb[0].mxu0
    %1178 = vmatprep.mubr.f32.mxu0 0.0
    %1179 = vmatmul.mubr.f32.gmra.mrb[0].mxu0 %v1041
    %v1180 = vpop.f32.mrb[0].mxu0
    %v1181 = vadd.f32 %v1072, %v1180
    %v1182 = vpop.f32.mrb[0].mxu0
    %1183 = vmatprep.mubr.f32.mxu0 0.0
    %1184 = vmatmul.mubr.f32.gmra.mrb[0].mxu0 %v1042
    %v1185 = vpop.f32.mrb[0].mxu0
    %v1186 = vadd.f32 %v1072, %v1185
    %v1187 = vpop.f32.mrb[0].mxu0
    %1188 = vmatprep.mubr.f32.mxu0 0.0
    %1189 = vmatmul.mubr.f32.gmra.mrb[0].mxu0 %v1043
    %v1190 = vpop.f32.mrb[0].mxu0
    %v1191 = vadd.f32 %v1072, %v1190
    %v1192 = vpop.f32.mrb[0].mxu0
    %1193 = vmatprep.mubr.f32.mxu0 0.0
    %1194 = vmatmul.mubr.f32.gmra.mrb[0].mxu0 %v1044
    %v1195 = vpop.f32.mrb[0].mxu0
    %v1196 = vadd.f32 %v1072, %v1195
    %v1197 = vpop.f32.mrb[0].mxu0
    %1198 = vmatprep.mubr.f32.mxu0 0.0
    %1199 = vmatmul.mubr.f32.gmra.mrb[0].mxu0 %v1045
    %v1200 = vpop.f32.mrb[0].mxu0
    %v1201 = vadd.f32 %v1072, %v1200
    %v1202 = vpop.f32.mrb[0].mxu0
    %1203 = vmatprep.mubr.f32.mxu0 0.0
    %1204 = vmatmul.mubr.f32.gmra.mrb[0].mxu0 %v1046
    %v1205 = vpop.f32.mrb[0].mxu0
    %v1206 = vadd.f32 %v1072, %v1205
    %v1207 = vpop.f32.mrb[0].mxu0
    %1208 = vmatprep.mubr.f32.mxu0 0.0
    %1209 = vmatmul.mubr.f32.gmra.mrb[0].mxu0 %v1047
    %v1210 = vpop.f32.mrb[0].mxu0
    %v1211 = vadd.f32 %v1072, %v1210
    %v1212 = vpop.f32.mrb[0].mxu0
    %1213 = vmatprep.mubr.f32.mxu0 0.0
    %1214 = vmatmul.mubr.f32.gmra.mrb[0].mxu0 %v1048
    %v1215 = vpop.f32.mrb[0].mxu0
    %v1216 = vadd.f32 %v1072, %v1215
    %v1217 = vpop.f32.mrb[0].mxu0
    %1218 = vdwg.mxu0
    %v1219 = vmax.f32 %v1141, 0.0
    %v1220 = vmax.f32 %v1146, 0.0
    %v1221 = vmax.f32 %v1151, 0.0
    %v1222 = vmax.f32 %v1156, 0.0
    %v1223 = vmax.f32 %v1161, 0.0
    %v1224 = vmax.f32 %v1166, 0.0
    %v1225 = vmax.f32 %v1171, 0.0
    %v1226 = vmax.f32 %v1176, 0.0
    %v1227 = vmax.f32 %v1181, 0.0
    %v1228 = vmax.f32 %v1186, 0.0
    %v1229 = vmax.f32 %v1191, 0.0
    %v1230 = vmax.f32 %v1196, 0.0
    %v1231 = vmax.f32 %v1201, 0.0
    %v1232 = vmax.f32 %v1206, 0.0
    %v1233 = vmax.f32 %v1211, 0.0
    %v1234 = vmax.f32 %v1216, 0.0
    %v1235 = vadd.f32 %v1219, %v670
    %v1236 = vadd.f32 %v1220, %v671
    %v1237 = vadd.f32 %v1221, %v672
    %v1238 = vadd.f32 %v1222, %v673
    %v1239 = vadd.f32 %v1223, %v674
    %v1240 = vadd.f32 %v1224, %v675
    %v1241 = vadd.f32 %v1225, %v676
    %v1242 = vadd.f32 %v1226, %v677
    %v1243 = vadd.f32 %v1227, %v678
    %v1244 = vadd.f32 %v1228, %v679
    %v1245 = vadd.f32 %v1229, %v680
    %v1246 = vadd.f32 %v1230, %v681
    %v1247 = vadd.f32 %v1231, %v682
    %v1248 = vadd.f32 %v1232, %v683
    %v1249 = vadd.f32 %v1233, %v684
    %v1250 = vadd.f32 %v1234, %v685
    %v1251 = vmax.f32 %v1235, 0.0
    %v1252 = vmax.f32 %v1236, 0.0
    %v1253 = vmax.f32 %v1237, 0.0
    %v1254 = vmax.f32 %v1238, 0.0
    %v1255 = vmax.f32 %v1239, 0.0
    %v1256 = vmax.f32 %v1240, 0.0
    %v1257 = vmax.f32 %v1241, 0.0
    %v1258 = vmax.f32 %v1242, 0.0
    %v1259 = vmax.f32 %v1243, 0.0
    %v1260 = vmax.f32 %v1244, 0.0
    %v1261 = vmax.f32 %v1245, 0.0
    %v1262 = vmax.f32 %v1246, 0.0
    %v1263 = vmax.f32 %v1247, 0.0
    %v1264 = vmax.f32 %v1248, 0.0
    %v1265 = vmax.f32 %v1249, 0.0
    %v1266 = vmax.f32 %v1250, 0.0
    %1267 = vmatprep.subr.mxu0 0.0
    %1268 = vmatpush1.msra.mxu0 %v1251
    %1269 = vmatprep.subr.mxu0 0.0
    %1270 = vmatpush1.msra.mxu0 %v1252
    %1271 = vmatprep.subr.mxu0 0.0
    %1272 = vmatpush1.msra.mxu0 %v1253
    %1273 = vmatprep.subr.mxu0 0.0
    %1274 = vmatpush1.msra.mxu0 %v1254
    %1275 = vmatprep.subr.mxu0 0.0
    %1276 = vmatpush1.msra.mxu0 %v1255
    %1277 = vmatprep.subr.mxu0 0.0
    %1278 = vmatpush1.msra.mxu0 %v1256
    %1279 = vmatprep.subr.mxu0 0.0
    %1280 = vmatpush1.msra.mxu0 %v1257
    %1281 = vmatprep.subr.mxu0 0.0
    %1282 = vmatpush1.msra.mxu0 %v1258
    %1283 = vmatprep.subr.mxu0 0.0
    %1284 = vmatpush1.msra.mxu0 %v1259
    %1285 = vmatprep.subr.mxu0 0.0
    %1286 = vmatpush1.msra.mxu0 %v1260
    %1287 = vmatprep.subr.mxu0 0.0
    %1288 = vmatpush1.msra.mxu0 %v1261
    %1289 = vmatprep.subr.mxu0 0.0
    %1290 = vmatpush1.msra.mxu0 %v1262
    %1291 = vmatprep.subr.mxu0 0.0
    %1292 = vmatpush1.msra.mxu0 %v1263
    %1293 = vmatprep.subr.mxu0 0.0
    %1294 = vmatpush1.msra.mxu0 %v1264
    %1295 = vmatprep.subr.mxu0 0.0
    %1296 = vmatpush1.msra.mxu0 %v1265
    %1297 = vmatprep.subr.mxu0 0.0
    %1298 = vmatpush1.msra.mxu0 %v1266
    %1299 = vmatprep.subr.mxu0 0.0
    %1300 = vmatpush1.msra.mxu0 0.0
    %1301 = vmatprep.subr.mxu0 0.0
    %1302 = vmatpush1.msra.mxu0 0.0
    %1303 = vmatprep.subr.mxu0 0.0
    %1304 = vmatpush1.msra.mxu0 0.0
    %1305 = vmatprep.subr.mxu0 0.0
    %1306 = vmatpush1.msra.mxu0 0.0
    %1307 = vmatprep.subr.mxu0 0.0
    %1308 = vmatpush1.msra.mxu0 0.0
    %1309 = vmatprep.subr.mxu0 0.0
    %1310 = vmatpush1.msra.mxu0 0.0
    %1311 = vmatprep.subr.mxu0 0.0
    %1312 = vmatpush1.msra.mxu0 0.0
    %1313 = vmatprep.subr.mxu0 0.0
    %1314 = vmatpush1.msra.mxu0 0.0
    %1315 = vmatprep.subr.mxu0 0.0
    %1316 = vmatpush1.msra.mxu0 0.0
    %1317 = vmatprep.subr.mxu0 0.0
    %1318 = vmatpush1.msra.mxu0 0.0
    %1319 = vmatprep.subr.mxu0 0.0
    %1320 = vmatpush1.msra.mxu0 0.0
    %1321 = vmatprep.subr.mxu0 0.0
    %1322 = vmatpush1.msra.mxu0 0.0
    %1323 = vmatprep.subr.mxu0 0.0
    %1324 = vmatpush1.msra.mxu0 0.0
    %1325 = vmatprep.subr.mxu0 0.0
    %1326 = vmatpush1.msra.mxu0 0.0
    %1327 = vmatprep.subr.mxu0 0.0
    %1328 = vmatpush1.msra.mxu0 0.0
    %1329 = vmatprep.subr.mxu0 0.0
    %1330 = vmatpush1.msra.mxu0 0.0
    %1331 = vmatprep.mubr.f32.mxu0 0.0
    %1332 = vmatmul.mubr.f32.gmra.mrb[0].mxu0 %v93
    %v1333 = vpop.f32.mrb[0].mxu0
    %v1334 = vadd.f32 0.0, %v1333
    %v1335 = vpop.f32.mrb[0].mxu0
    %1336 = vmatprep.mubr.f32.mxu0 0.0
    %1337 = vmatmul.mubr.f32.gmra.mrb[0].mxu0 %v94
    %v1338 = vpop.f32.mrb[0].mxu0
    %v1339 = vadd.f32 0.0, %v1338
    %v1340 = vpop.f32.mrb[0].mxu0
    %1341 = vmatprep.mubr.f32.mxu0 0.0
    %1342 = vmatmul.mubr.f32.gmra.mrb[0].mxu0 %v95
    %v1343 = vpop.f32.mrb[0].mxu0
    %v1344 = vadd.f32 0.0, %v1343
    %v1345 = vpop.f32.mrb[0].mxu0
    %1346 = vmatprep.mubr.f32.mxu0 0.0
    %1347 = vmatmul.mubr.f32.gmra.mrb[0].mxu0 %v96
    %v1348 = vpop.f32.mrb[0].mxu0
    %v1349 = vadd.f32 0.0, %v1348
    %v1350 = vpop.f32.mrb[0].mxu0
    %1351 = vmatprep.mubr.f32.mxu0 0.0
    %1352 = vmatmul.mubr.f32.gmra.mrb[0].mxu0 %v97
    %v1353 = vpop.f32.mrb[0].mxu0
    %v1354 = vadd.f32 0.0, %v1353
    %v1355 = vpop.f32.mrb[0].mxu0
    %1356 = vmatprep.mubr.f32.mxu0 0.0
    %1357 = vmatmul.mubr.f32.gmra.mrb[0].mxu0 %v98
    %v1358 = vpop.f32.mrb[0].mxu0
    %v1359 = vadd.f32 0.0, %v1358
    %v1360 = vpop.f32.mrb[0].mxu0
    %1361 = vmatprep.mubr.f32.mxu0 0.0
    %1362 = vmatmul.mubr.f32.gmra.mrb[0].mxu0 %v99
    %v1363 = vpop.f32.mrb[0].mxu0
    %v1364 = vadd.f32 0.0, %v1363
    %v1365 = vpop.f32.mrb[0].mxu0
    %1366 = vmatprep.mubr.f32.mxu0 0.0
    %1367 = vmatmul.mubr.f32.gmra.mrb[0].mxu0 %v100
    %v1368 = vpop.f32.mrb[0].mxu0
    %v1369 = vadd.f32 0.0, %v1368
    %v1370 = vpop.f32.mrb[0].mxu0
    %1371 = vmatprep.mubr.f32.mxu0 0.0
    %1372 = vmatmul.mubr.f32.gmra.mrb[0].mxu0 %v101
    %v1373 = vpop.f32.mrb[0].mxu0
    %v1374 = vadd.f32 0.0, %v1373
    %v1375 = vpop.f32.mrb[0].mxu0
    %1376 = vmatprep.mubr.f32.mxu0 0.0
    %1377 = vmatmul.mubr.f32.gmra.mrb[0].mxu0 %v102
    %v1378 = vpop.f32.mrb[0].mxu0
    %v1379 = vadd.f32 0.0, %v1378
    %v1380 = vpop.f32.mrb[0].mxu0
    %1381 = vmatprep.mubr.f32.mxu0 0.0
    %1382 = vmatmul.mubr.f32.gmra.mrb[0].mxu0 %v103
    %v1383 = vpop.f32.mrb[0].mxu0
    %v1384 = vadd.f32 0.0, %v1383
    %v1385 = vpop.f32.mrb[0].mxu0
    %1386 = vmatprep.mubr.f32.mxu0 0.0
    %1387 = vmatmul.mubr.f32.gmra.mrb[0].mxu0 %v104
    %v1388 = vpop.f32.mrb[0].mxu0
    %v1389 = vadd.f32 0.0, %v1388
    %v1390 = vpop.f32.mrb[0].mxu0
    %1391 = vmatprep.mubr.f32.mxu0 0.0
    %1392 = vmatmul.mubr.f32.gmra.mrb[0].mxu0 %v105
    %v1393 = vpop.f32.mrb[0].mxu0
    %v1394 = vadd.f32 0.0, %v1393
    %v1395 = vpop.f32.mrb[0].mxu0
    %1396 = vmatprep.mubr.f32.mxu0 0.0
    %1397 = vmatmul.mubr.f32.gmra.mrb[0].mxu0 %v106
    %v1398 = vpop.f32.mrb[0].mxu0
    %v1399 = vadd.f32 0.0, %v1398
    %v1400 = vpop.f32.mrb[0].mxu0
    %1401 = vmatprep.mubr.f32.mxu0 0.0
    %1402 = vmatmul.mubr.f32.gmra.mrb[0].mxu0 %v107
    %v1403 = vpop.f32.mrb[0].mxu0
    %v1404 = vadd.f32 0.0, %v1403
    %v1405 = vpop.f32.mrb[0].mxu0
    %1406 = vmatprep.mubr.f32.mxu0 0.0
    %1407 = vmatmul.mubr.f32.gmra.mrb[0].mxu0 %v108
    %v1408 = vpop.f32.mrb[0].mxu0
    %v1409 = vadd.f32 0.0, %v1408
    %v1410 = vpop.f32.mrb[0].mxu0
    %1411 = vdwg.mxu0
    %v1412 = vadd.f32 %v1235, %v1334
    %v1413 = vadd.f32 %v1236, %v1339
    %v1414 = vadd.f32 %v1237, %v1344
    %v1415 = vadd.f32 %v1238, %v1349
    %v1416 = vadd.f32 %v1239, %v1354
    %v1417 = vadd.f32 %v1240, %v1359
    %v1418 = vadd.f32 %v1241, %v1364
    %v1419 = vadd.f32 %v1242, %v1369
    %v1420 = vadd.f32 %v1243, %v1374
    %v1421 = vadd.f32 %v1244, %v1379
    %v1422 = vadd.f32 %v1245, %v1384
    %v1423 = vadd.f32 %v1246, %v1389
    %v1424 = vadd.f32 %v1247, %v1394
    %v1425 = vadd.f32 %v1248, %v1399
    %v1426 = vadd.f32 %v1249, %v1404
    %v1427 = vadd.f32 %v1250, %v1409
    %s1428 = scalar_lea.vmem [#allocation8], 256
    %v1429 = vld [vmem:[%s1428] sm:$0xff]
    %v1430 = vld [vmem:[%s1428 + $0x8] sm:$0xff]
    %v1431 = vld [vmem:[%s1428 + $0x10] sm:$0xff]
    %v1432 = vld [vmem:[%s1428 + $0x18] sm:$0xff]
    %v1433 = vld [vmem:[%s1428 + $0x20] sm:$0xff]
    %v1434 = vld [vmem:[%s1428 + $0x28] sm:$0xff]
    %v1435 = vld [vmem:[%s1428 + $0x30] sm:$0xff]
    %v1436 = vld [vmem:[%s1428 + $0x38] sm:$0xff]
    %v1437 = vld [vmem:[%s1428 + $0x40] sm:$0xff]
    %v1438 = vld [vmem:[%s1428 + $0x48] sm:$0xff]
    %v1439 = vld [vmem:[%s1428 + $0x50] sm:$0xff]
    %v1440 = vld [vmem:[%s1428 + $0x58] sm:$0xff]
    %v1441 = vld [vmem:[%s1428 + $0x60] sm:$0xff]
    %v1442 = vld [vmem:[%s1428 + $0x68] sm:$0xff]
    %v1443 = vld [vmem:[%s1428 + $0x70] sm:$0xff]
    %v1444 = vld [vmem:[%s1428 + $0x78] sm:$0xff]
    %s1445 = scalar_lea.vmem %s4, 2
    %v1446 = vld [vmem:[%s1445] sm:$0x1]
    %v1448 = vlaneseq
    %v1449 = vshrl.u32 %v1448, 7
    %v1450 = vsub.s32 0, %v1449
    %v1451 = vrot.slane %v1446, %v1450
    %1453 = vmatprep.subr.mxu0 0.0
    %1454 = vmatpush1.msra.mxu0 %v1429
    %1455 = vmatprep.subr.mxu0 0.0
    %1456 = vmatpush1.msra.mxu0 %v1430
    %1457 = vmatprep.subr.mxu0 0.0
    %1458 = vmatpush1.msra.mxu0 %v1431
    %1459 = vmatprep.subr.mxu0 0.0
    %1460 = vmatpush1.msra.mxu0 %v1432
    %1461 = vmatprep.subr.mxu0 0.0
    %1462 = vmatpush1.msra.mxu0 %v1433
    %1463 = vmatprep.subr.mxu0 0.0
    %1464 = vmatpush1.msra.mxu0 %v1434
    %1465 = vmatprep.subr.mxu0 0.0
    %1466 = vmatpush1.msra.mxu0 %v1435
    %1467 = vmatprep.subr.mxu0 0.0
    %1468 = vmatpush1.msra.mxu0 %v1436
    %1469 = vmatprep.subr.mxu0 0.0
    %1470 = vmatpush1.msra.mxu0 %v1437
    %1471 = vmatprep.subr.mxu0 0.0
    %1472 = vmatpush1.msra.mxu0 %v1438
    %1473 = vmatprep.subr.mxu0 0.0
    %1474 = vmatpush1.msra.mxu0 %v1439
    %1475 = vmatprep.subr.mxu0 0.0
    %1476 = vmatpush1.msra.mxu0 %v1440
    %1477 = vmatprep.subr.mxu0 0.0
    %1478 = vmatpush1.msra.mxu0 %v1441
    %1479 = vmatprep.subr.mxu0 0.0
    %1480 = vmatpush1.msra.mxu0 %v1442
    %1481 = vmatprep.subr.mxu0 0.0
    %1482 = vmatpush1.msra.mxu0 %v1443
    %1483 = vmatprep.subr.mxu0 0.0
    %1484 = vmatpush1.msra.mxu0 %v1444
    %1485 = vmatprep.subr.mxu0 0.0
    %1486 = vmatpush1.msra.mxu0 0.0
    %1487 = vmatprep.subr.mxu0 0.0
    %1488 = vmatpush1.msra.mxu0 0.0
    %1489 = vmatprep.subr.mxu0 0.0
    %1490 = vmatpush1.msra.mxu0 0.0
    %1491 = vmatprep.subr.mxu0 0.0
    %1492 = vmatpush1.msra.mxu0 0.0
    %1493 = vmatprep.subr.mxu0 0.0
    %1494 = vmatpush1.msra.mxu0 0.0
    %1495 = vmatprep.subr.mxu0 0.0
    %1496 = vmatpush1.msra.mxu0 0.0
    %1497 = vmatprep.subr.mxu0 0.0
    %1498 = vmatpush1.msra.mxu0 0.0
    %1499 = vmatprep.subr.mxu0 0.0
    %1500 = vmatpush1.msra.mxu0 0.0
    %1501 = vmatprep.subr.mxu0 0.0
    %1502 = vmatpush1.msra.mxu0 0.0
    %1503 = vmatprep.subr.mxu0 0.0
    %1504 = vmatpush1.msra.mxu0 0.0
    %1505 = vmatprep.subr.mxu0 0.0
    %1506 = vmatpush1.msra.mxu0 0.0
    %1507 = vmatprep.subr.mxu0 0.0
    %1508 = vmatpush1.msra.mxu0 0.0
    %1509 = vmatprep.subr.mxu0 0.0
    %1510 = vmatpush1.msra.mxu0 0.0
    %1511 = vmatprep.subr.mxu0 0.0
    %1512 = vmatpush1.msra.mxu0 0.0
    %1513 = vmatprep.subr.mxu0 0.0
    %1514 = vmatpush1.msra.mxu0 0.0
    %1515 = vmatprep.subr.mxu0 0.0
    %1516 = vmatpush1.msra.mxu0 0.0
    %1517 = vmatprep.mubr.f32.mxu0 0.0
    %1518 = vmatmul.mubr.f32.gmra.mrb[0].mxu0 %v1412
    %v1519 = vpop.f32.mrb[0].mxu0
    %v1520 = vadd.f32 %v1451, %v1519
    %v1521 = vpop.f32.mrb[0].mxu0
    %1522 = vmatprep.mubr.f32.mxu0 0.0
    %1523 = vmatmul.mubr.f32.gmra.mrb[0].mxu0 %v1413
    %v1524 = vpop.f32.mrb[0].mxu0
    %v1525 = vadd.f32 %v1451, %v1524
    %v1526 = vpop.f32.mrb[0].mxu0
    %1527 = vmatprep.mubr.f32.mxu0 0.0
    %1528 = vmatmul.mubr.f32.gmra.mrb[0].mxu0 %v1414
    %v1529 = vpop.f32.mrb[0].mxu0
    %v1530 = vadd.f32 %v1451, %v1529
    %v1531 = vpop.f32.mrb[0].mxu0
    %1532 = vmatprep.mubr.f32.mxu0 0.0
    %1533 = vmatmul.mubr.f32.gmra.mrb[0].mxu0 %v1415
    %v1534 = vpop.f32.mrb[0].mxu0
    %v1535 = vadd.f32 %v1451, %v1534
    %v1536 = vpop.f32.mrb[0].mxu0
    %1537 = vmatprep.mubr.f32.mxu0 0.0
    %1538 = vmatmul.mubr.f32.gmra.mrb[0].mxu0 %v1416
    %v1539 = vpop.f32.mrb[0].mxu0
    %v1540 = vadd.f32 %v1451, %v1539
    %v1541 = vpop.f32.mrb[0].mxu0
    %1542 = vmatprep.mubr.f32.mxu0 0.0
    %1543 = vmatmul.mubr.f32.gmra.mrb[0].mxu0 %v1417
    %v1544 = vpop.f32.mrb[0].mxu0
    %v1545 = vadd.f32 %v1451, %v1544
    %v1546 = vpop.f32.mrb[0].mxu0
    %1547 = vmatprep.mubr.f32.mxu0 0.0
    %1548 = vmatmul.mubr.f32.gmra.mrb[0].mxu0 %v1418
    %v1549 = vpop.f32.mrb[0].mxu0
    %v1550 = vadd.f32 %v1451, %v1549
    %v1551 = vpop.f32.mrb[0].mxu0
    %1552 = vmatprep.mubr.f32.mxu0 0.0
    %1553 = vmatmul.mubr.f32.gmra.mrb[0].mxu0 %v1419
    %v1554 = vpop.f32.mrb[0].mxu0
    %v1555 = vadd.f32 %v1451, %v1554
    %v1556 = vpop.f32.mrb[0].mxu0
    %1557 = vmatprep.mubr.f32.mxu0 0.0
    %1558 = vmatmul.mubr.f32.gmra.mrb[0].mxu0 %v1420
    %v1559 = vpop.f32.mrb[0].mxu0
    %v1560 = vadd.f32 %v1451, %v1559
    %v1561 = vpop.f32.mrb[0].mxu0
    %1562 = vmatprep.mubr.f32.mxu0 0.0
    %1563 = vmatmul.mubr.f32.gmra.mrb[0].mxu0 %v1421
    %v1564 = vpop.f32.mrb[0].mxu0
    %v1565 = vadd.f32 %v1451, %v1564
    %v1566 = vpop.f32.mrb[0].mxu0
    %1567 = vmatprep.mubr.f32.mxu0 0.0
    %1568 = vmatmul.mubr.f32.gmra.mrb[0].mxu0 %v1422
    %v1569 = vpop.f32.mrb[0].mxu0
    %v1570 = vadd.f32 %v1451, %v1569
    %v1571 = vpop.f32.mrb[0].mxu0
    %1572 = vmatprep.mubr.f32.mxu0 0.0
    %1573 = vmatmul.mubr.f32.gmra.mrb[0].mxu0 %v1423
    %v1574 = vpop.f32.mrb[0].mxu0
    %v1575 = vadd.f32 %v1451, %v1574
    %v1576 = vpop.f32.mrb[0].mxu0
    %1577 = vmatprep.mubr.f32.mxu0 0.0
    %1578 = vmatmul.mubr.f32.gmra.mrb[0].mxu0 %v1424
    %v1579 = vpop.f32.mrb[0].mxu0
    %v1580 = vadd.f32 %v1451, %v1579
    %v1581 = vpop.f32.mrb[0].mxu0
    %1582 = vmatprep.mubr.f32.mxu0 0.0
    %1583 = vmatmul.mubr.f32.gmra.mrb[0].mxu0 %v1425
    %v1584 = vpop.f32.mrb[0].mxu0
    %v1585 = vadd.f32 %v1451, %v1584
    %v1586 = vpop.f32.mrb[0].mxu0
    %1587 = vmatprep.mubr.f32.mxu0 0.0
    %1588 = vmatmul.mubr.f32.gmra.mrb[0].mxu0 %v1426
    %v1589 = vpop.f32.mrb[0].mxu0
    %v1590 = vadd.f32 %v1451, %v1589
    %v1591 = vpop.f32.mrb[0].mxu0
    %1592 = vmatprep.mubr.f32.mxu0 0.0
    %1593 = vmatmul.mubr.f32.gmra.mrb[0].mxu0 %v1427
    %v1594 = vpop.f32.mrb[0].mxu0
    %v1595 = vadd.f32 %v1451, %v1594
    %v1596 = vpop.f32.mrb[0].mxu0
    %1597 = vdwg.mxu0
    %v1598 = vmax.f32 %v1520, 0.0
    %v1599 = vmax.f32 %v1525, 0.0
    %v1600 = vmax.f32 %v1530, 0.0
    %v1601 = vmax.f32 %v1535, 0.0
    %v1602 = vmax.f32 %v1540, 0.0
    %v1603 = vmax.f32 %v1545, 0.0
    %v1604 = vmax.f32 %v1550, 0.0
    %v1605 = vmax.f32 %v1555, 0.0
    %v1606 = vmax.f32 %v1560, 0.0
    %v1607 = vmax.f32 %v1565, 0.0
    %v1608 = vmax.f32 %v1570, 0.0
    %v1609 = vmax.f32 %v1575, 0.0
    %v1610 = vmax.f32 %v1580, 0.0
    %v1611 = vmax.f32 %v1585, 0.0
    %v1612 = vmax.f32 %v1590, 0.0
    %v1613 = vmax.f32 %v1595, 0.0
    %s1614 = scalar_lea.vmem [#allocation10], 256
    %v1615 = vld [vmem:[%s1614] sm:$0xff]
    %v1616 = vld [vmem:[%s1614 + $0x8] sm:$0xff]
    %v1617 = vld [vmem:[%s1614 + $0x10] sm:$0xff]
    %v1618 = vld [vmem:[%s1614 + $0x18] sm:$0xff]
    %v1619 = vld [vmem:[%s1614 + $0x20] sm:$0xff]
    %v1620 = vld [vmem:[%s1614 + $0x28] sm:$0xff]
    %v1621 = vld [vmem:[%s1614 + $0x30] sm:$0xff]
    %v1622 = vld [vmem:[%s1614 + $0x38] sm:$0xff]
    %v1623 = vld [vmem:[%s1614 + $0x40] sm:$0xff]
    %v1624 = vld [vmem:[%s1614 + $0x48] sm:$0xff]
    %v1625 = vld [vmem:[%s1614 + $0x50] sm:$0xff]
    %v1626 = vld [vmem:[%s1614 + $0x58] sm:$0xff]
    %v1627 = vld [vmem:[%s1614 + $0x60] sm:$0xff]
    %v1628 = vld [vmem:[%s1614 + $0x68] sm:$0xff]
    %v1629 = vld [vmem:[%s1614 + $0x70] sm:$0xff]
    %v1630 = vld [vmem:[%s1614 + $0x78] sm:$0xff]
    %s1631 = scalar_lea.vmem %s6, 2
    %v1632 = vld [vmem:[%s1631] sm:$0x1]
    %v1634 = vlaneseq
    %v1635 = vshrl.u32 %v1634, 7
    %v1636 = vsub.s32 0, %v1635
    %v1637 = vrot.slane %v1632, %v1636
    %1639 = vmatprep.subr.mxu0 0.0
    %1640 = vmatpush1.msra.mxu0 %v1615
    %1641 = vmatprep.subr.mxu0 0.0
    %1642 = vmatpush1.msra.mxu0 %v1616
    %1643 = vmatprep.subr.mxu0 0.0
    %1644 = vmatpush1.msra.mxu0 %v1617
    %1645 = vmatprep.subr.mxu0 0.0
    %1646 = vmatpush1.msra.mxu0 %v1618
    %1647 = vmatprep.subr.mxu0 0.0
    %1648 = vmatpush1.msra.mxu0 %v1619
    %1649 = vmatprep.subr.mxu0 0.0
    %1650 = vmatpush1.msra.mxu0 %v1620
    %1651 = vmatprep.subr.mxu0 0.0
    %1652 = vmatpush1.msra.mxu0 %v1621
    %1653 = vmatprep.subr.mxu0 0.0
    %1654 = vmatpush1.msra.mxu0 %v1622
    %1655 = vmatprep.subr.mxu0 0.0
    %1656 = vmatpush1.msra.mxu0 %v1623
    %1657 = vmatprep.subr.mxu0 0.0
    %1658 = vmatpush1.msra.mxu0 %v1624
    %1659 = vmatprep.subr.mxu0 0.0
    %1660 = vmatpush1.msra.mxu0 %v1625
    %1661 = vmatprep.subr.mxu0 0.0
    %1662 = vmatpush1.msra.mxu0 %v1626
    %1663 = vmatprep.subr.mxu0 0.0
    %1664 = vmatpush1.msra.mxu0 %v1627
    %1665 = vmatprep.subr.mxu0 0.0
    %1666 = vmatpush1.msra.mxu0 %v1628
    %1667 = vmatprep.subr.mxu0 0.0
    %1668 = vmatpush1.msra.mxu0 %v1629
    %1669 = vmatprep.subr.mxu0 0.0
    %1670 = vmatpush1.msra.mxu0 %v1630
    %1671 = vmatprep.subr.mxu0 0.0
    %1672 = vmatpush1.msra.mxu0 0.0
    %1673 = vmatprep.subr.mxu0 0.0
    %1674 = vmatpush1.msra.mxu0 0.0
    %1675 = vmatprep.subr.mxu0 0.0
    %1676 = vmatpush1.msra.mxu0 0.0
    %1677 = vmatprep.subr.mxu0 0.0
    %1678 = vmatpush1.msra.mxu0 0.0
    %1679 = vmatprep.subr.mxu0 0.0
    %1680 = vmatpush1.msra.mxu0 0.0
    %1681 = vmatprep.subr.mxu0 0.0
    %1682 = vmatpush1.msra.mxu0 0.0
    %1683 = vmatprep.subr.mxu0 0.0
    %1684 = vmatpush1.msra.mxu0 0.0
    %1685 = vmatprep.subr.mxu0 0.0
    %1686 = vmatpush1.msra.mxu0 0.0
    %1687 = vmatprep.subr.mxu0 0.0
    %1688 = vmatpush1.msra.mxu0 0.0
    %1689 = vmatprep.subr.mxu0 0.0
    %1690 = vmatpush1.msra.mxu0 0.0
    %1691 = vmatprep.subr.mxu0 0.0
    %1692 = vmatpush1.msra.mxu0 0.0
    %1693 = vmatprep.subr.mxu0 0.0
    %1694 = vmatpush1.msra.mxu0 0.0
    %1695 = vmatprep.subr.mxu0 0.0
    %1696 = vmatpush1.msra.mxu0 0.0
    %1697 = vmatprep.subr.mxu0 0.0
    %1698 = vmatpush1.msra.mxu0 0.0
    %1699 = vmatprep.subr.mxu0 0.0
    %1700 = vmatpush1.msra.mxu0 0.0
    %1701 = vmatprep.subr.mxu0 0.0
    %1702 = vmatpush1.msra.mxu0 0.0
    %1703 = vmatprep.mubr.f32.mxu0 0.0
    %1704 = vmatmul.mubr.f32.gmra.mrb[0].mxu0 %v1598
    %v1705 = vpop.f32.mrb[0].mxu0
    %v1706 = vadd.f32 %v1637, %v1705
    %v1707 = vpop.f32.mrb[0].mxu0
    %1708 = vmatprep.mubr.f32.mxu0 0.0
    %1709 = vmatmul.mubr.f32.gmra.mrb[0].mxu0 %v1599
    %v1710 = vpop.f32.mrb[0].mxu0
    %v1711 = vadd.f32 %v1637, %v1710
    %v1712 = vpop.f32.mrb[0].mxu0
    %1713 = vmatprep.mubr.f32.mxu0 0.0
    %1714 = vmatmul.mubr.f32.gmra.mrb[0].mxu0 %v1600
    %v1715 = vpop.f32.mrb[0].mxu0
    %v1716 = vadd.f32 %v1637, %v1715
    %v1717 = vpop.f32.mrb[0].mxu0
    %1718 = vmatprep.mubr.f32.mxu0 0.0
    %1719 = vmatmul.mubr.f32.gmra.mrb[0].mxu0 %v1601
    %v1720 = vpop.f32.mrb[0].mxu0
    %v1721 = vadd.f32 %v1637, %v1720
    %v1722 = vpop.f32.mrb[0].mxu0
    %1723 = vmatprep.mubr.f32.mxu0 0.0
    %1724 = vmatmul.mubr.f32.gmra.mrb[0].mxu0 %v1602
    %v1725 = vpop.f32.mrb[0].mxu0
    %v1726 = vadd.f32 %v1637, %v1725
    %v1727 = vpop.f32.mrb[0].mxu0
    %1728 = vmatprep.mubr.f32.mxu0 0.0
    %1729 = vmatmul.mubr.f32.gmra.mrb[0].mxu0 %v1603
    %v1730 = vpop.f32.mrb[0].mxu0
    %v1731 = vadd.f32 %v1637, %v1730
    %v1732 = vpop.f32.mrb[0].mxu0
    %1733 = vmatprep.mubr.f32.mxu0 0.0
    %1734 = vmatmul.mubr.f32.gmra.mrb[0].mxu0 %v1604
    %v1735 = vpop.f32.mrb[0].mxu0
    %v1736 = vadd.f32 %v1637, %v1735
    %v1737 = vpop.f32.mrb[0].mxu0
    %1738 = vmatprep.mubr.f32.mxu0 0.0
    %1739 = vmatmul.mubr.f32.gmra.mrb[0].mxu0 %v1605
    %v1740 = vpop.f32.mrb[0].mxu0
    %v1741 = vadd.f32 %v1637, %v1740
    %v1742 = vpop.f32.mrb[0].mxu0
    %1743 = vmatprep.mubr.f32.mxu0 0.0
    %1744 = vmatmul.mubr.f32.gmra.mrb[0].mxu0 %v1606
    %v1745 = vpop.f32.mrb[0].mxu0
    %v1746 = vadd.f32 %v1637, %v1745
    %v1747 = vpop.f32.mrb[0].mxu0
    %1748 = vmatprep.mubr.f32.mxu0 0.0
    %1749 = vmatmul.mubr.f32.gmra.mrb[0].mxu0 %v1607
    %v1750 = vpop.f32.mrb[0].mxu0
    %v1751 = vadd.f32 %v1637, %v1750
    %v1752 = vpop.f32.mrb[0].mxu0
    %1753 = vmatprep.mubr.f32.mxu0 0.0
    %1754 = vmatmul.mubr.f32.gmra.mrb[0].mxu0 %v1608
    %v1755 = vpop.f32.mrb[0].mxu0
    %v1756 = vadd.f32 %v1637, %v1755
    %v1757 = vpop.f32.mrb[0].mxu0
    %1758 = vmatprep.mubr.f32.mxu0 0.0
    %1759 = vmatmul.mubr.f32.gmra.mrb[0].mxu0 %v1609
    %v1760 = vpop.f32.mrb[0].mxu0
    %v1761 = vadd.f32 %v1637, %v1760
    %v1762 = vpop.f32.mrb[0].mxu0
    %1763 = vmatprep.mubr.f32.mxu0 0.0
    %1764 = vmatmul.mubr.f32.gmra.mrb[0].mxu0 %v1610
    %v1765 = vpop.f32.mrb[0].mxu0
    %v1766 = vadd.f32 %v1637, %v1765
    %v1767 = vpop.f32.mrb[0].mxu0
    %1768 = vmatprep.mubr.f32.mxu0 0.0
    %1769 = vmatmul.mubr.f32.gmra.mrb[0].mxu0 %v1611
    %v1770 = vpop.f32.mrb[0].mxu0
    %v1771 = vadd.f32 %v1637, %v1770
    %v1772 = vpop.f32.mrb[0].mxu0
    %1773 = vmatprep.mubr.f32.mxu0 0.0
    %1774 = vmatmul.mubr.f32.gmra.mrb[0].mxu0 %v1612
    %v1775 = vpop.f32.mrb[0].mxu0
    %v1776 = vadd.f32 %v1637, %v1775
    %v1777 = vpop.f32.mrb[0].mxu0
    %1778 = vmatprep.mubr.f32.mxu0 0.0
    %1779 = vmatmul.mubr.f32.gmra.mrb[0].mxu0 %v1613
    %v1780 = vpop.f32.mrb[0].mxu0
    %v1781 = vadd.f32 %v1637, %v1780
    %v1782 = vpop.f32.mrb[0].mxu0
    %1783 = vdwg.mxu0
    %v1784 = vadd.f32 %v1706, %v1235
    %v1785 = vadd.f32 %v1711, %v1236
    %v1786 = vadd.f32 %v1716, %v1237
    %v1787 = vadd.f32 %v1721, %v1238
    %v1788 = vadd.f32 %v1726, %v1239
    %v1789 = vadd.f32 %v1731, %v1240
    %v1790 = vadd.f32 %v1736, %v1241
    %v1791 = vadd.f32 %v1741, %v1242
    %v1792 = vadd.f32 %v1746, %v1243
    %v1793 = vadd.f32 %v1751, %v1244
    %v1794 = vadd.f32 %v1756, %v1245
    %v1795 = vadd.f32 %v1761, %v1246
    %v1796 = vadd.f32 %v1766, %v1247
    %v1797 = vadd.f32 %v1771, %v1248
    %v1798 = vadd.f32 %v1776, %v1249
    %v1799 = vadd.f32 %v1781, %v1250
    %v1800 = vld [vmem:[#allocation7] sm:$0xff]
    %1801 = vmatprep.subr.mxu0 0.0
    %1802 = vmatpush1.msra.mxu0 %v1784
    %1803 = vmatprep.subr.mxu0 0.0
    %1804 = vmatpush1.msra.mxu0 %v1785
    %1805 = vmatprep.subr.mxu0 0.0
    %1806 = vmatpush1.msra.mxu0 %v1786
    %1807 = vmatprep.subr.mxu0 0.0
    %1808 = vmatpush1.msra.mxu0 %v1787
    %1809 = vmatprep.subr.mxu0 0.0
    %1810 = vmatpush1.msra.mxu0 %v1788
    %1811 = vmatprep.subr.mxu0 0.0
    %1812 = vmatpush1.msra.mxu0 %v1789
    %1813 = vmatprep.subr.mxu0 0.0
    %1814 = vmatpush1.msra.mxu0 %v1790
    %1815 = vmatprep.subr.mxu0 0.0
    %1816 = vmatpush1.msra.mxu0 %v1791
    %1817 = vmatprep.subr.mxu0 0.0
    %1818 = vmatpush1.msra.mxu0 %v1792
    %1819 = vmatprep.subr.mxu0 0.0
    %1820 = vmatpush1.msra.mxu0 %v1793
    %1821 = vmatprep.subr.mxu0 0.0
    %1822 = vmatpush1.msra.mxu0 %v1794
    %1823 = vmatprep.subr.mxu0 0.0
    %1824 = vmatpush1.msra.mxu0 %v1795
    %1825 = vmatprep.subr.mxu0 0.0
    %1826 = vmatpush1.msra.mxu0 %v1796
    %1827 = vmatprep.subr.mxu0 0.0
    %1828 = vmatpush1.msra.mxu0 %v1797
    %1829 = vmatprep.subr.mxu0 0.0
    %1830 = vmatpush1.msra.mxu0 %v1798
    %1831 = vmatprep.subr.mxu0 0.0
    %1832 = vmatpush1.msra.mxu0 %v1799
    %1833 = vmatprep.subr.mxu0 0.0
    %1834 = vmatpush1.msra.mxu0 0.0
    %1835 = vmatprep.subr.mxu0 0.0
    %1836 = vmatpush1.msra.mxu0 0.0
    %1837 = vmatprep.subr.mxu0 0.0
    %1838 = vmatpush1.msra.mxu0 0.0
    %1839 = vmatprep.subr.mxu0 0.0
    %1840 = vmatpush1.msra.mxu0 0.0
    %1841 = vmatprep.subr.mxu0 0.0
    %1842 = vmatpush1.msra.mxu0 0.0
    %1843 = vmatprep.subr.mxu0 0.0
    %1844 = vmatpush1.msra.mxu0 0.0
    %1845 = vmatprep.subr.mxu0 0.0
    %1846 = vmatpush1.msra.mxu0 0.0
    %1847 = vmatprep.subr.mxu0 0.0
    %1848 = vmatpush1.msra.mxu0 0.0
    %1849 = vmatprep.subr.mxu0 0.0
    %1850 = vmatpush1.msra.mxu0 0.0
    %1851 = vmatprep.subr.mxu0 0.0
    %1852 = vmatpush1.msra.mxu0 0.0
    %1853 = vmatprep.subr.mxu0 0.0
    %1854 = vmatpush1.msra.mxu0 0.0
    %1855 = vmatprep.subr.mxu0 0.0
    %1856 = vmatpush1.msra.mxu0 0.0
    %1857 = vmatprep.subr.mxu0 0.0
    %1858 = vmatpush1.msra.mxu0 0.0
    %1859 = vmatprep.subr.mxu0 0.0
    %1860 = vmatpush1.msra.mxu0 0.0
    %1861 = vmatprep.subr.mxu0 0.0
    %1862 = vmatpush1.msra.mxu0 0.0
    %1863 = vmatprep.subr.mxu0 0.0
    %1864 = vmatpush1.msra.mxu0 0.0
    %1865 = vmatprep.mubr.f32.mxu0 0.0
    %1866 = vmatmul.mubr.f32.gmra.mrb[0].mxu0 %v1800
    %v1867 = vpop.f32.mrb[0].mxu0
    %v1868 = vadd.f32 0.0, %v1867
    %v1869 = vpop.f32.mrb[0].mxu0
    %1870 = vdwg.mxu0
    %1871 = vst [vmem:[#allocation11] sm:$0xff] %v1868
    // Predicated region
    $region50: #{tpu_custom_call.1} parent=1 // pred_check
      _
    $region51: #{tpu_custom_call.1} parent=1 // pred_check_branch
      %1873 = sbr.rel (0) target = $region53
    $region52: #{tpu_custom_call.1} parent=1 // pred_region
      %s1875 = ssub.s32 128, 128
      %1876 = vsyncadd [#allocation4], %s1875
      %s1878 = sshll.u32 [#allocation11], 4
      %s1879 = int_to_ptr.vmem [resolvable:$true] %s1878
      %1881 = dma.vmem_to_hbm [thread:$0]  %s1879, 128, %s7, [#allocation4]
    $region53: #{tpu_custom_call.1} parent=1 // pred_fallthru
      _
    // Predicated region
    $region54: #{tpu_custom_call.1} parent=1 // pred_check
      _
    $region55: #{tpu_custom_call.1} parent=1 // pred_check_branch
      %1883 = sbr.rel (0) target = $region57
    $region56: #{tpu_custom_call.1} parent=1 // pred_region
      %1884 = dma.done [#allocation4], 128
    $region57: #{tpu_custom_call.1} parent=1 // pred_fallthru
      _
    %1885 = vsyncpa [#allocation3], 1
    %1886 = vsyncpa [#allocation6], 1
    %1887 = vsyncpa [#allocation9], 1
    %1888 = vsyncpa [#allocation4], 1

</llo_original>
